<compile_context>
chip_gen: v5e
topology: v5e:2x2
jax: 0.10.0
libtpu: 0.0.40
codegen_flags: <defaults>
</compile_context>

<pallas_src>
import functools

import jax
import jax.numpy as jnp
from jax.experimental import pallas as pl
from jax.experimental.pallas import tpu as pltpu

IMG = 32 * 32  # flattened 32x32 image -> 1024 features


def _autoencoder_kernel(
    x_ref,
    w1_ref, b1_ref,
    w2_ref, b2_ref,
    w34_ref, b34_ref,
    w5_ref, b5_ref,
    w6_ref, b6_ref,
    out_ref,
):
    def dense(h, w_ref, b_ref):
        # bf16 x bf16 matmul on the MXU, f32 accumulation, f32 bias add.
        return jnp.dot(h, w_ref[...], preferred_element_type=jnp.float32) + b_ref[...]

    h = x_ref[...].astype(jnp.bfloat16)

    # ---- Encoder: 1024 -> 256 -> 128 ----
    h = jnp.maximum(dense(h, w1_ref, b1_ref), 0.0).astype(jnp.bfloat16)    # ReLU
    h = jnp.maximum(dense(h, w2_ref, b2_ref), 0.0).astype(jnp.bfloat16)    # ReLU

    # ---- Folded latent bottleneck (128 -> latent -> 128) + decoder ReLU ----
    h = jnp.maximum(dense(h, w34_ref, b34_ref), 0.0).astype(jnp.bfloat16)  # ReLU

    # ---- Decoder tail: 128 -> 256 -> 1024 ----
    h = jnp.maximum(dense(h, w5_ref, b5_ref), 0.0).astype(jnp.bfloat16)    # ReLU
    logits = dense(h, w6_ref, b6_ref)                                      # f32

    # Sigmoid via tanh: one EUP op + one VALU FMA (vs exp + reciprocal).
    y = 0.5 * (1.0 + jnp.tanh(0.5 * logits))
    out_ref[...] = y.astype(out_ref.dtype)


def _round_up(n, m):
    return (n + m - 1) // m * m


def _fold_latent(params):
    """Fold w3/w4 (and b3/b4) into a single lane-dense 128x128 layer."""
    w3 = params["w3"].astype(jnp.float32)
    w4 = params["w4"].astype(jnp.float32)
    b3 = params["b3"].astype(jnp.float32)
    b4 = params["b4"].astype(jnp.float32)
    w34 = (w3 @ w4).astype(jnp.bfloat16)
    b34 = (b3 @ w4 + b4).astype(jnp.float32)
    return [
        (params["w1"], params["b1"]),
        (params["w2"], params["b2"]),
        (w34, b34),
        (params["w5"], params["b5"]),
        (params["w6"], params["b6"]),
    ]


def contrastive_diffusion_autoencoder(
    x, params, *, block_b=512, out_dtype=None, vmem_limit_bytes=None
):
    """Forward pass matching the PyTorch module (returns the reconstruction).

    x: (B, 1024) float32.
    params: dict with w1..w6 stored as (in_dim, out_dim) bf16 (so the kernel
    computes x @ W + b, equivalent to PyTorch's x @ W.T + b) and b1..b6 as
    (1, out_dim) f32.
    """
    B, D = x.shape
    assert D == IMG
    out_dtype = x.dtype if out_dtype is None else out_dtype

    # Batch tile: multiple of 8 sublanes, capped by block_b and by the padded
    # batch (never more ghost rows than one 8-row sublane pad).
    TB = min(_round_up(block_b, 8), _round_up(B, 8))
    Bp = _round_up(B, TB)
    if Bp != B:
        x = jnp.pad(x, ((0, Bp - B), (0, 0)))
    grid = (Bp // TB,)

    layers = _fold_latent(params)

    flat_args = [x]
    in_specs = [pl.BlockSpec((TB, D), lambda i: (i, 0))]
    weight_bytes = 0
    flops = 0
    for w, b in layers:
        flat_args.append(w)
        flat_args.append(b)
        # Constant index_map -> weight/bias block stays VMEM-resident across
        # all batch-grid iterations (loaded once).
        in_specs.append(pl.BlockSpec(w.shape, lambda i: (0, 0)))
        in_specs.append(pl.BlockSpec(b.shape, lambda i: (0, 0)))
        weight_bytes += w.size * w.dtype.itemsize + b.size * b.dtype.itemsize
        flops += 2 * Bp * w.shape[0] * w.shape[1]

    io_bytes = Bp * D * (x.dtype.itemsize + jnp.dtype(out_dtype).itemsize)
    cost = pl.CostEstimate(
        flops=flops,
        transcendentals=Bp * D,  # final sigmoid tanh
        bytes_accessed=weight_bytes + io_bytes,
    )

    if vmem_limit_bytes is None:
        # Double-buffered in/out tiles + double-buffered weights + activation
        # scratch + headroom, clamped to <=64 MiB (v7x-safe). Override for
        # TB >= 2048 on v5e/v6e (128 MiB physical VMEM).
        tile_io = TB * D * (x.dtype.itemsize + jnp.dtype(out_dtype).itemsize)
        est = 2 * tile_io + 2 * weight_bytes + 3 * TB * D * 4
        vmem_limit_bytes = min(max(est + (16 << 20), 32 << 20), 64 << 20)

    out = pl.pallas_call(
        _autoencoder_kernel,
        out_shape=jax.ShapeDtypeStruct((Bp, D), out_dtype),
        grid=grid,
        in_specs=in_specs,
        out_specs=pl.BlockSpec((TB, D), lambda i: (i, 0)),
        compiler_params=pltpu.CompilerParams(
            dimension_semantics=("parallel",),  # shard batch grid across TCs on v7x
            vmem_limit_bytes=vmem_limit_bytes,
        ),
        cost_estimate=cost,
    )(*flat_args)

    return out[:B] if Bp != B else out


def init_params(key, latent_dim):
    """PyTorch-style Linear init U(-1/sqrt(fan_in), 1/sqrt(fan_in)).

    Weights stored (in_dim, out_dim) in bf16; biases (1, out_dim) in f32.
    """
    dims = [
        (IMG, 256),          # encoder.0
        (256, 128),          # encoder.2
        (128, latent_dim),   # encoder.4
        (latent_dim, 128),   # decoder.0
        (128, 256),          # decoder.2
        (256, IMG),          # decoder.4
    ]
    params = {}
    for i, (fan_in, fan_out) in enumerate(dims, start=1):
        key, kw, kb = jax.random.split(key, 3)
        bound = 1.0 / jnp.sqrt(jnp.float32(fan_in))
        params[f"w{i}"] = jax.random.uniform(
            kw, (fan_in, fan_out), jnp.float32, -bound, bound
        ).astype(jnp.bfloat16)
        params[f"b{i}"] = jax.random.uniform(
            kb, (1, fan_out), jnp.float32, -bound, bound
        )
    return params


def reference_forward(x, params):
    """Pure-JAX f32 reference (unfolded) using the same bf16-quantized weights."""
    p = {k: v.astype(jnp.float32) for k, v in params.items()}
    h = jnp.maximum(x @ p["w1"] + p["b1"], 0.0)
    h = jnp.maximum(h @ p["w2"] + p["b2"], 0.0)
    z = h @ p["w3"] + p["b3"]
    h = jnp.maximum(z @ p["w4"] + p["b4"], 0.0)
    h = jnp.maximum(h @ p["w5"] + p["b5"], 0.0)
    return jax.nn.sigmoid(h @ p["w6"] + p["b6"])


if __name__ == "__main__":
    latent_dim = 64
    B = 64

    key = jax.random.PRNGKey(0)
    key, kx = jax.random.split(key)
    x = jax.random.normal(kx, (B, IMG), jnp.float32)
    params = init_params(key, latent_dim)

    # block_b=32 -> 2 batch-grid steps at this small B, exercising the
    # pipelined batch axis with VMEM-resident weights.  Production default is
    # block_b=512 (raise to 1024+ with an explicit vmem_limit on v5e/v6e).
    fwd = jax.jit(
        functools.partial(
            contrastive_diffusion_autoencoder, params=params, block_b=32
        )
    )
    out = fwd(x)
    jax.block_until_ready(out)

    ref = reference_forward(x, params)
    assert out.shape == (B, IMG)
    # bf16 activations + folded latent layer -> relaxed tolerance vs f32 ref.
    assert jnp.allclose(out, ref, atol=2e-2, rtol=2e-2), "mismatch vs reference"

    print("KERNEL_OK")
</pallas_src>

<mosaic_0001>
module attributes {stable_mosaic.version = 11 : i64} {
  func.func @_autoencoder_kernel(%arg0: i32, %arg1: memref<32x1024xf32, #tpu.memory_space<vmem>>, %arg2: memref<1024x256xbf16, #tpu.memory_space<vmem>>, %arg3: memref<1x256xf32, #tpu.memory_space<vmem>>, %arg4: memref<256x128xbf16, #tpu.memory_space<vmem>>, %arg5: memref<1x128xf32, #tpu.memory_space<vmem>>, %arg6: memref<128x128xbf16, #tpu.memory_space<vmem>>, %arg7: memref<1x128xf32, #tpu.memory_space<vmem>>, %arg8: memref<128x256xbf16, #tpu.memory_space<vmem>>, %arg9: memref<1x256xf32, #tpu.memory_space<vmem>>, %arg10: memref<256x1024xbf16, #tpu.memory_space<vmem>>, %arg11: memref<1x1024xf32, #tpu.memory_space<vmem>>, %arg12: memref<32x1024xf32, #tpu.memory_space<vmem>>) attributes {dimension_semantics = [#tpu.dimension_semantics<parallel>], iteration_bounds = array<i64: 2>, scalar_prefetch = 0 : i64, scratch_operands = 0 : i64, tpu.core_type = #tpu.core_type<tc>, window_params = [{transform_indices = @transform_0, window_bounds = array<i64: 32, 1024>}, {pipeline_mode = #tpu.pipeline_mode<synchronous>, transform_indices = @transform_1, window_bounds = array<i64: 1024, 256>}, {pipeline_mode = #tpu.pipeline_mode<synchronous>, transform_indices = @transform_2, window_bounds = array<i64: 1, 256>}, {pipeline_mode = #tpu.pipeline_mode<synchronous>, transform_indices = @transform_3, window_bounds = array<i64: 256, 128>}, {pipeline_mode = #tpu.pipeline_mode<synchronous>, transform_indices = @transform_4, window_bounds = array<i64: 1, 128>}, {pipeline_mode = #tpu.pipeline_mode<synchronous>, transform_indices = @transform_5, window_bounds = array<i64: 128, 128>}, {pipeline_mode = #tpu.pipeline_mode<synchronous>, transform_indices = @transform_6, window_bounds = array<i64: 1, 128>}, {pipeline_mode = #tpu.pipeline_mode<synchronous>, transform_indices = @transform_7, window_bounds = array<i64: 128, 256>}, {pipeline_mode = #tpu.pipeline_mode<synchronous>, transform_indices = @transform_8, window_bounds = array<i64: 1, 256>}, {pipeline_mode = #tpu.pipeline_mode<synchronous>, transform_indices = @transform_9, window_bounds = array<i64: 256, 1024>}, {pipeline_mode = #tpu.pipeline_mode<synchronous>, transform_indices = @transform_10, window_bounds = array<i64: 1, 1024>}, {transform_indices = @transform_11, window_bounds = array<i64: 32, 1024>}]} {
    %c0 = arith.constant 0 : index
    %c0_0 = arith.constant 0 : index
    %0 = vector.load %arg1[%c0, %c0_0] : memref<32x1024xf32, #tpu.memory_space<vmem>>, vector<32x1024xf32>
    %1 = arith.truncf %0 : vector<32x1024xf32> to vector<32x1024xbf16>
    %c0_1 = arith.constant 0 : index
    %c0_2 = arith.constant 0 : index
    %2 = vector.load %arg2[%c0_1, %c0_2] : memref<1024x256xbf16, #tpu.memory_space<vmem>>, vector<1024x256xbf16>
    %cst = arith.constant dense<0.000000e+00> : vector<32x256xf32>
    %3 = tpu.matmul %1, %2, %cst {dimension_numbers = #tpu.dot_dimension_numbers<[1], [0], [0], [1], [0, 0, 1, 1], [], []>} : vector<32x1024xbf16>, vector<1024x256xbf16>, vector<32x256xf32> -> vector<32x256xf32>
    %c0_3 = arith.constant 0 : index
    %c0_4 = arith.constant 0 : index
    %4 = vector.load %arg3[%c0_3, %c0_4] : memref<1x256xf32, #tpu.memory_space<vmem>>, vector<1x256xf32>
    %5 = vector.broadcast %4 : vector<1x256xf32> to vector<32x256xf32>
    %6 = arith.addf %3, %5 : vector<32x256xf32>
    %cst_5 = arith.constant 0.000000e+00 : f32
    %7 = vector.broadcast %cst_5 : f32 to vector<32x256xf32>
    %8 = arith.maximumf %6, %7 : vector<32x256xf32>
    %9 = arith.truncf %8 : vector<32x256xf32> to vector<32x256xbf16>
    %c0_6 = arith.constant 0 : index
    %c0_7 = arith.constant 0 : index
    %10 = vector.load %arg4[%c0_6, %c0_7] : memref<256x128xbf16, #tpu.memory_space<vmem>>, vector<256x128xbf16>
    %cst_8 = arith.constant dense<0.000000e+00> : vector<32x128xf32>
    %11 = tpu.matmul %9, %10, %cst_8 {dimension_numbers = #tpu.dot_dimension_numbers<[1], [0], [0], [1], [0, 0, 1, 1], [], []>} : vector<32x256xbf16>, vector<256x128xbf16>, vector<32x128xf32> -> vector<32x128xf32>
    %c0_9 = arith.constant 0 : index
    %c0_10 = arith.constant 0 : index
    %12 = vector.load %arg5[%c0_9, %c0_10] : memref<1x128xf32, #tpu.memory_space<vmem>>, vector<1x128xf32>
    %13 = vector.broadcast %12 : vector<1x128xf32> to vector<32x128xf32>
    %14 = arith.addf %11, %13 : vector<32x128xf32>
    %cst_11 = arith.constant 0.000000e+00 : f32
    %15 = vector.broadcast %cst_11 : f32 to vector<32x128xf32>
    %16 = arith.maximumf %14, %15 : vector<32x128xf32>
    %17 = arith.truncf %16 : vector<32x128xf32> to vector<32x128xbf16>
    %c0_12 = arith.constant 0 : index
    %c0_13 = arith.constant 0 : index
    %18 = vector.load %arg6[%c0_12, %c0_13] : memref<128x128xbf16, #tpu.memory_space<vmem>>, vector<128x128xbf16>
    %cst_14 = arith.constant dense<0.000000e+00> : vector<32x128xf32>
    %19 = tpu.matmul %17, %18, %cst_14 {dimension_numbers = #tpu.dot_dimension_numbers<[1], [0], [0], [1], [0, 0, 1, 1], [], []>} : vector<32x128xbf16>, vector<128x128xbf16>, vector<32x128xf32> -> vector<32x128xf32>
    %c0_15 = arith.constant 0 : index
    %c0_16 = arith.constant 0 : index
    %20 = vector.load %arg7[%c0_15, %c0_16] : memref<1x128xf32, #tpu.memory_space<vmem>>, vector<1x128xf32>
    %21 = vector.broadcast %20 : vector<1x128xf32> to vector<32x128xf32>
    %22 = arith.addf %19, %21 : vector<32x128xf32>
    %cst_17 = arith.constant 0.000000e+00 : f32
    %23 = vector.broadcast %cst_17 : f32 to vector<32x128xf32>
    %24 = arith.maximumf %22, %23 : vector<32x128xf32>
    %25 = arith.truncf %24 : vector<32x128xf32> to vector<32x128xbf16>
    %c0_18 = arith.constant 0 : index
    %c0_19 = arith.constant 0 : index
    %26 = vector.load %arg8[%c0_18, %c0_19] : memref<128x256xbf16, #tpu.memory_space<vmem>>, vector<128x256xbf16>
    %cst_20 = arith.constant dense<0.000000e+00> : vector<32x256xf32>
    %27 = tpu.matmul %25, %26, %cst_20 {dimension_numbers = #tpu.dot_dimension_numbers<[1], [0], [0], [1], [0, 0, 1, 1], [], []>} : vector<32x128xbf16>, vector<128x256xbf16>, vector<32x256xf32> -> vector<32x256xf32>
    %c0_21 = arith.constant 0 : index
    %c0_22 = arith.constant 0 : index
    %28 = vector.load %arg9[%c0_21, %c0_22] : memref<1x256xf32, #tpu.memory_space<vmem>>, vector<1x256xf32>
    %29 = vector.broadcast %28 : vector<1x256xf32> to vector<32x256xf32>
    %30 = arith.addf %27, %29 : vector<32x256xf32>
    %cst_23 = arith.constant 0.000000e+00 : f32
    %31 = vector.broadcast %cst_23 : f32 to vector<32x256xf32>
    %32 = arith.maximumf %30, %31 : vector<32x256xf32>
    %33 = arith.truncf %32 : vector<32x256xf32> to vector<32x256xbf16>
    %c0_24 = arith.constant 0 : index
    %c0_25 = arith.constant 0 : index
    %34 = vector.load %arg10[%c0_24, %c0_25] : memref<256x1024xbf16, #tpu.memory_space<vmem>>, vector<256x1024xbf16>
    %cst_26 = arith.constant dense<0.000000e+00> : vector<32x1024xf32>
    %35 = tpu.matmul %33, %34, %cst_26 {dimension_numbers = #tpu.dot_dimension_numbers<[1], [0], [0], [1], [0, 0, 1, 1], [], []>} : vector<32x256xbf16>, vector<256x1024xbf16>, vector<32x1024xf32> -> vector<32x1024xf32>
    %c0_27 = arith.constant 0 : index
    %c0_28 = arith.constant 0 : index
    %36 = vector.load %arg11[%c0_27, %c0_28] : memref<1x1024xf32, #tpu.memory_space<vmem>>, vector<1x1024xf32>
    %37 = vector.broadcast %36 : vector<1x1024xf32> to vector<32x1024xf32>
    %38 = arith.addf %35, %37 : vector<32x1024xf32>
    %cst_29 = arith.constant 5.000000e-01 : f32
    %39 = vector.broadcast %cst_29 : f32 to vector<32x1024xf32>
    %40 = arith.mulf %39, %38 : vector<32x1024xf32>
    %41 = math.tanh %40 : vector<32x1024xf32>
    %cst_30 = arith.constant 1.000000e+00 : f32
    %42 = vector.broadcast %cst_30 : f32 to vector<32x1024xf32>
    %43 = arith.addf %42, %41 : vector<32x1024xf32>
    %cst_31 = arith.constant 5.000000e-01 : f32
    %44 = vector.broadcast %cst_31 : f32 to vector<32x1024xf32>
    %45 = arith.mulf %44, %43 : vector<32x1024xf32>
    %c0_32 = arith.constant 0 : index
    %c0_33 = arith.constant 0 : index
    %46 = vector.load %arg12[%c0_32, %c0_33] : memref<32x1024xf32, #tpu.memory_space<vmem>>, vector<32x1024xf32>
    tpu.vector_store %arg12[%c0_32, %c0_33], %45 {strides = array<i32>} : memref<32x1024xf32, #tpu.memory_space<vmem>>, vector<32x1024xf32>,
    return
  }
  func.func @transform_0(%arg0: i32) -> (i32, i32) {
    %c0_i32 = arith.constant 0 : i32
    %c0_i32_0 = arith.constant 0 : i32
    return %arg0, %c0_i32 : i32, i32
  }
  func.func @transform_1(%arg0: i32) -> (i32, i32) {
    %c0_i32 = arith.constant 0 : i32
    %c0_i32_0 = arith.constant 0 : i32
    %c0_i32_1 = arith.constant 0 : i32
    return %c0_i32, %c0_i32_0 : i32, i32
  }
  func.func @transform_2(%arg0: i32) -> (i32, i32) {
    %c0_i32 = arith.constant 0 : i32
    %c0_i32_0 = arith.constant 0 : i32
    %c0_i32_1 = arith.constant 0 : i32
    return %c0_i32, %c0_i32_0 : i32, i32
  }
  func.func @transform_3(%arg0: i32) -> (i32, i32) {
    %c0_i32 = arith.constant 0 : i32
    %c0_i32_0 = arith.constant 0 : i32
    %c0_i32_1 = arith.constant 0 : i32
    return %c0_i32, %c0_i32_0 : i32, i32
  }
  func.func @transform_4(%arg0: i32) -> (i32, i32) {
    %c0_i32 = arith.constant 0 : i32
    %c0_i32_0 = arith.constant 0 : i32
    %c0_i32_1 = arith.constant 0 : i32
    return %c0_i32, %c0_i32_0 : i32, i32
  }
  func.func @transform_5(%arg0: i32) -> (i32, i32) {
    %c0_i32 = arith.constant 0 : i32
    %c0_i32_0 = arith.constant 0 : i32
    %c0_i32_1 = arith.constant 0 : i32
    return %c0_i32, %c0_i32_0 : i32, i32
  }
  func.func @transform_6(%arg0: i32) -> (i32, i32) {
    %c0_i32 = arith.constant 0 : i32
    %c0_i32_0 = arith.constant 0 : i32
    %c0_i32_1 = arith.constant 0 : i32
    return %c0_i32, %c0_i32_0 : i32, i32
  }
  func.func @transform_7(%arg0: i32) -> (i32, i32) {
    %c0_i32 = arith.constant 0 : i32
    %c0_i32_0 = arith.constant 0 : i32
    %c0_i32_1 = arith.constant 0 : i32
    return %c0_i32, %c0_i32_0 : i32, i32
  }
  func.func @transform_8(%arg0: i32) -> (i32, i32) {
    %c0_i32 = arith.constant 0 : i32
    %c0_i32_0 = arith.constant 0 : i32
    %c0_i32_1 = arith.constant 0 : i32
    return %c0_i32, %c0_i32_0 : i32, i32
  }
  func.func @transform_9(%arg0: i32) -> (i32, i32) {
    %c0_i32 = arith.constant 0 : i32
    %c0_i32_0 = arith.constant 0 : i32
    %c0_i32_1 = arith.constant 0 : i32
    return %c0_i32, %c0_i32_0 : i32, i32
  }
  func.func @transform_10(%arg0: i32) -> (i32, i32) {
    %c0_i32 = arith.constant 0 : i32
    %c0_i32_0 = arith.constant 0 : i32
    %c0_i32_1 = arith.constant 0 : i32
    return %c0_i32, %c0_i32_0 : i32, i32
  }
  func.func @transform_11(%arg0: i32) -> (i32, i32) {
    %c0_i32 = arith.constant 0 : i32
    %c0_i32_0 = arith.constant 0 : i32
    return %arg0, %c0_i32 : i32, i32
  }
}

</mosaic_0001>

<llo_original>
// kernel: contrastive_diffusion_autoencoder.1
$region0: #{contrastive_diffusion_autoencoder.1}
  #allocation0 [shape = 'u32[]', space=smem, size = 0x4, offset = 0x4, fixed_abs, tag = 'smem constant byte address 0x4 - core index']
  #allocation1 [shape = 'u32[72,128]{1,0:T(1,128)}', space=vmem, size = 0x9000, scoped, tag = 'internal scratch']
  %s0 = inlined_call_operand.hbm [shape: f32[64,1024], index: 0, kind: input, shape index: {}]
  %s1 = inlined_call_operand.hbm [shape: bf16[1024,256], index: 1, kind: input, shape index: {}]
  %s2 = inlined_call_operand.hbm [shape: f32[1,256], index: 2, kind: input, shape index: {}]
  %s3 = inlined_call_operand.hbm [shape: bf16[256,128], index: 3, kind: input, shape index: {}]
  %s4 = inlined_call_operand.hbm [shape: f32[1,128], index: 4, kind: input, shape index: {}]
  %s5 = inlined_call_operand.hbm [shape: bf16[128,128], index: 5, kind: input, shape index: {}]
  %s6 = inlined_call_operand.vmem [shape: f32[1,128], index: 6, kind: input, shape index: {}]
  %s7 = inlined_call_operand.hbm [shape: bf16[128,256], index: 7, kind: input, shape index: {}]
  %s8 = inlined_call_operand.vmem [shape: f32[1,256], index: 8, kind: input, shape index: {}]
  %s9 = inlined_call_operand.hbm [shape: bf16[256,1024], index: 9, kind: input, shape index: {}]
  %s10 = inlined_call_operand.hbm [shape: f32[1,1024], index: 10, kind: input, shape index: {}]
  %s11 = inlined_call_operand.hbm [shape: f32[64,1024], index: 11, kind: output, shape index: {}]
  %s12 = sld [smem:[#allocation0]]
  $region113: #{contrastive_diffusion_autoencoder.1} parent=0
    _
  %s14 = ssub.s32 1, %s12
  %s15 = scalar_select 0, %s14, %s12
  $region1: #{contrastive_diffusion_autoencoder.1} parent=0
    #allocation2 [shape = 'u8[262144]{0}', space=vmem, size = 0x40000, scoped, tag = 'input window, operand 0']
    #allocation3 [shape = 's32[2]{0}', space=sflag, size = 0x8, scoped, tag = 'scoped memory for contrastive_diffusion_autoencoder.1']
    #allocation4 [shape = 's32[2]{0}', space=sflag, size = 0x8, scoped, tag = 'scoped memory for contrastive_diffusion_autoencoder.1']
    #allocation5 [shape = 'u8[524288]{0}', space=vmem, size = 0x80000, scoped, tag = 'input window, operand 1, single buffered']
    #allocation6 [shape = 's32[1]{0}', space=sflag, size = 0x4, scoped, tag = 'scoped memory for contrastive_diffusion_autoencoder.1']
    #allocation7 [shape = 'u8[1024]{0}', space=vmem, size = 0x400, scoped, tag = 'input window, operand 2, single buffered']
    #allocation8 [shape = 'u8[65536]{0}', space=vmem, size = 0x10000, scoped, tag = 'input window, operand 3, single buffered']
    #allocation9 [shape = 's32[1]{0}', space=sflag, size = 0x4, scoped, tag = 'scoped memory for contrastive_diffusion_autoencoder.1']
    #allocation10 [shape = 'u8[512]{0}', space=vmem, size = 0x400, scoped, tag = 'input window, operand 4, single buffered']
    #allocation11 [shape = 'u8[32768]{0}', space=vmem, size = 0x8000, scoped, tag = 'input window, operand 5, single buffered']
    #allocation12 [shape = 's32[1]{0}', space=sflag, size = 0x4, scoped, tag = 'scoped memory for contrastive_diffusion_autoencoder.1']
    #allocation13 [shape = 'u8[65536]{0}', space=vmem, size = 0x10000, scoped, tag = 'input window, operand 7, single buffered']
    #allocation14 [shape = 'u8[524288]{0}', space=vmem, size = 0x80000, scoped, tag = 'input window, operand 9, single buffered']
    #allocation15 [shape = 's32[1]{0}', space=sflag, size = 0x4, scoped, tag = 'scoped memory for contrastive_diffusion_autoencoder.1']
    #allocation16 [shape = 'u8[4096]{0}', space=vmem, size = 0x1000, scoped, tag = 'input window, operand 10, single buffered']
    #allocation17 [shape = 'u8[262144]{0}', space=vmem, size = 0x40000, scoped, tag = 'output window, operand 0']
    %16 = vsyncpa [#allocation3], 0
    %s17 = scalar_lea.sflag [#allocation3], 1
    %18 = vsyncpa %s17, 0
    %19 = vsyncpa [#allocation6], 0
    %20 = vsyncpa [#allocation9], 0
    %21 = vsyncpa [#allocation12], 0
    %22 = vsyncpa [#allocation15], 0
    %23 = vsyncpa [#allocation4], 0
    %s24 = scalar_lea.sflag [#allocation4], 1
    %25 = vsyncpa %s24, 0
    loop: start=0, step=1, limit=4
    $region2: #{contrastive_diffusion_autoencoder.1} parent=1 // loop_pre_header
      _
    $region3: #{contrastive_diffusion_autoencoder.1} parent=1 // loop_header
      %s27 = sphi 0, %s31
      %p28 = scmp.ge.s32.totalorder %s27, 4
      %s37 = sphi 0, %s39
      %s40 = sphi 0, %s37
      %s41 = sphi 0, %s40
      %s57 = sphi 0, %s41
      %s61 = sphi 0, %s61
      %s63 = sphi 0, %s61
      %s64 = sphi 0, %s63
      %s78 = sphi 0, %s64
      %s82 = sphi 0, %s82
      %s84 = sphi 0, %s82
      %s85 = sphi 0, %s84
      %s99 = sphi 0, %s85
      %s103 = sphi 0, %s103
      %s105 = sphi 0, %s103
      %s106 = sphi 0, %s105
      %s120 = sphi 0, %s106
      %s124 = sphi 0, %s124
      %s126 = sphi 0, %s124
      %s127 = sphi 0, %s126
      %s141 = sphi 0, %s127
      %s145 = sphi 0, %s145
      %s147 = sphi 0, %s145
      %s148 = sphi 0, %s147
      %s162 = sphi 0, %s148
      %s166 = sphi 0, %s166
      %s168 = sphi 0, %s166
      %s169 = sphi 0, %s168
      %s183 = sphi 0, %s169
      %s187 = sphi 0, %s187
      %s189 = sphi 0, %s187
      %s190 = sphi 0, %s189
      %s204 = sphi 0, %s190
      %s208 = sphi 0, %s208
      %s210 = sphi 0, %s208
      %s211 = sphi 0, %s210
      %s225 = sphi 0, %s211
      %s229 = sphi 0, %s229
      %s231 = sphi 0, %s229
      %s232 = sphi 0, %s231
      %s246 = sphi 0, %s232
      %s250 = sphi 0, %s250
      %s252 = sphi 0, %s250
      %s253 = sphi 0, %s252
      %s267 = sphi 0, %s253
      %s273 = sphi 0, %s275
      %s276 = sphi 0, %s273
      %s277 = sphi 0, %s276
      %s293 = sphi 0, %s277
    $region4: #{contrastive_diffusion_autoencoder.1} parent=1 // loop_header_branch
      %30 = sbr.rel (%p28) target = $region8
    $region5: #{contrastive_diffusion_autoencoder.1} parent=1 // loop_body
      %s32 = ssub.s32 %s27, 1
      %s33 = ssub.s32 %s27, 2
      %s34 = sadd.s32 %s27, 1
      %s35 = ssub.s32 %s27, %s34
      %p36 = scmp.eq.s32.totalorder %s35, 0
      %s38 = sadd.s32 %s37, 1
      %s39 = scalar_select %p36, %s37, %s38
      %p42 = pneg %p36
      %p43 = scmp.eq.s32.totalorder %s27, 1
      %p44 = por %p42, %p43
      %p45 = scmp.ne.s32.totalorder %s37, %s40
      %p46 = scmp.eq.s32.totalorder %s27, 0
      %p47 = por %p45, %p46
      %p48 = scmp.ne.s32.totalorder %s37, %s40
      %p49 = scmp.eq.s32.totalorder %s32, 1
      %p50 = por %p48, %p49
      %p51 = scmp.ne.s32.totalorder %s40, %s41
      %p52 = scmp.eq.s32.totalorder %s32, 0
      %p53 = por %p51, %p52
      %p54 = scmp.ne.s32.totalorder %s40, %s41
      %p55 = scmp.eq.s32.totalorder %s33, 1
      %p56 = por %p54, %p55
      %p58 = scmp.ne.s32.totalorder %s41, %s57
      %p59 = scmp.eq.s32.totalorder %s33, 0
      %p60 = por %p58, %p59
      %s62 = sadd.s32 %s61, 1
      %p65 = scmp.eq.s32.totalorder %s27, 1
      %p66 = scmp.ne.s32.totalorder %s61, %s63
      %p67 = scmp.eq.s32.totalorder %s27, 0
      %p68 = por %p66, %p67
      %p69 = scmp.ne.s32.totalorder %s61, %s63
      %p70 = scmp.eq.s32.totalorder %s32, 1
      %p71 = por %p69, %p70
      %p72 = scmp.ne.s32.totalorder %s63, %s64
      %p73 = scmp.eq.s32.totalorder %s32, 0
      %p74 = por %p72, %p73
      %p75 = scmp.ne.s32.totalorder %s63, %s64
      %p76 = scmp.eq.s32.totalorder %s33, 1
      %p77 = por %p75, %p76
      %p79 = scmp.ne.s32.totalorder %s64, %s78
      %p80 = scmp.eq.s32.totalorder %s33, 0
      %p81 = por %p79, %p80
      %s83 = sadd.s32 %s82, 1
      %p86 = scmp.eq.s32.totalorder %s27, 1
      %p87 = scmp.ne.s32.totalorder %s82, %s84
      %p88 = scmp.eq.s32.totalorder %s27, 0
      %p89 = por %p87, %p88
      %p90 = scmp.ne.s32.totalorder %s82, %s84
      %p91 = scmp.eq.s32.totalorder %s32, 1
      %p92 = por %p90, %p91
      %p93 = scmp.ne.s32.totalorder %s84, %s85
      %p94 = scmp.eq.s32.totalorder %s32, 0
      %p95 = por %p93, %p94
      %p96 = scmp.ne.s32.totalorder %s84, %s85
      %p97 = scmp.eq.s32.totalorder %s33, 1
      %p98 = por %p96, %p97
      %p100 = scmp.ne.s32.totalorder %s85, %s99
      %p101 = scmp.eq.s32.totalorder %s33, 0
      %p102 = por %p100, %p101
      %s104 = sadd.s32 %s103, 1
      %p107 = scmp.eq.s32.totalorder %s27, 1
      %p108 = scmp.ne.s32.totalorder %s103, %s105
      %p109 = scmp.eq.s32.totalorder %s27, 0
      %p110 = por %p108, %p109
      %p111 = scmp.ne.s32.totalorder %s103, %s105
      %p112 = scmp.eq.s32.totalorder %s32, 1
      %p113 = por %p111, %p112
      %p114 = scmp.ne.s32.totalorder %s105, %s106
      %p115 = scmp.eq.s32.totalorder %s32, 0
      %p116 = por %p114, %p115
      %p117 = scmp.ne.s32.totalorder %s105, %s106
      %p118 = scmp.eq.s32.totalorder %s33, 1
      %p119 = por %p117, %p118
      %p121 = scmp.ne.s32.totalorder %s106, %s120
      %p122 = scmp.eq.s32.totalorder %s33, 0
      %p123 = por %p121, %p122
      %s125 = sadd.s32 %s124, 1
      %p128 = scmp.eq.s32.totalorder %s27, 1
      %p129 = scmp.ne.s32.totalorder %s124, %s126
      %p130 = scmp.eq.s32.totalorder %s27, 0
      %p131 = por %p129, %p130
      %p132 = scmp.ne.s32.totalorder %s124, %s126
      %p133 = scmp.eq.s32.totalorder %s32, 1
      %p134 = por %p132, %p133
      %p135 = scmp.ne.s32.totalorder %s126, %s127
      %p136 = scmp.eq.s32.totalorder %s32, 0
      %p137 = por %p135, %p136
      %p138 = scmp.ne.s32.totalorder %s126, %s127
      %p139 = scmp.eq.s32.totalorder %s33, 1
      %p140 = por %p138, %p139
      %p142 = scmp.ne.s32.totalorder %s127, %s141
      %p143 = scmp.eq.s32.totalorder %s33, 0
      %p144 = por %p142, %p143
      %s146 = sadd.s32 %s145, 1
      %p149 = scmp.eq.s32.totalorder %s27, 1
      %p150 = scmp.ne.s32.totalorder %s145, %s147
      %p151 = scmp.eq.s32.totalorder %s27, 0
      %p152 = por %p150, %p151
      %p153 = scmp.ne.s32.totalorder %s145, %s147
      %p154 = scmp.eq.s32.totalorder %s32, 1
      %p155 = por %p153, %p154
      %p156 = scmp.ne.s32.totalorder %s147, %s148
      %p157 = scmp.eq.s32.totalorder %s32, 0
      %p158 = por %p156, %p157
      %p159 = scmp.ne.s32.totalorder %s147, %s148
      %p160 = scmp.eq.s32.totalorder %s33, 1
      %p161 = por %p159, %p160
      %p163 = scmp.ne.s32.totalorder %s148, %s162
      %p164 = scmp.eq.s32.totalorder %s33, 0
      %p165 = por %p163, %p164
      %s167 = sadd.s32 %s166, 1
      %p170 = scmp.eq.s32.totalorder %s27, 1
      %p171 = scmp.ne.s32.totalorder %s166, %s168
      %p172 = scmp.eq.s32.totalorder %s27, 0
      %p173 = por %p171, %p172
      %p174 = scmp.ne.s32.totalorder %s166, %s168
      %p175 = scmp.eq.s32.totalorder %s32, 1
      %p176 = por %p174, %p175
      %p177 = scmp.ne.s32.totalorder %s168, %s169
      %p178 = scmp.eq.s32.totalorder %s32, 0
      %p179 = por %p177, %p178
      %p180 = scmp.ne.s32.totalorder %s168, %s169
      %p181 = scmp.eq.s32.totalorder %s33, 1
      %p182 = por %p180, %p181
      %p184 = scmp.ne.s32.totalorder %s169, %s183
      %p185 = scmp.eq.s32.totalorder %s33, 0
      %p186 = por %p184, %p185
      %s188 = sadd.s32 %s187, 1
      %p191 = scmp.eq.s32.totalorder %s27, 1
      %p192 = scmp.ne.s32.totalorder %s187, %s189
      %p193 = scmp.eq.s32.totalorder %s27, 0
      %p194 = por %p192, %p193
      %p195 = scmp.ne.s32.totalorder %s187, %s189
      %p196 = scmp.eq.s32.totalorder %s32, 1
      %p197 = por %p195, %p196
      %p198 = scmp.ne.s32.totalorder %s189, %s190
      %p199 = scmp.eq.s32.totalorder %s32, 0
      %p200 = por %p198, %p199
      %p201 = scmp.ne.s32.totalorder %s189, %s190
      %p202 = scmp.eq.s32.totalorder %s33, 1
      %p203 = por %p201, %p202
      %p205 = scmp.ne.s32.totalorder %s190, %s204
      %p206 = scmp.eq.s32.totalorder %s33, 0
      %p207 = por %p205, %p206
      %s209 = sadd.s32 %s208, 1
      %p212 = scmp.eq.s32.totalorder %s27, 1
      %p213 = scmp.ne.s32.totalorder %s208, %s210
      %p214 = scmp.eq.s32.totalorder %s27, 0
      %p215 = por %p213, %p214
      %p216 = scmp.ne.s32.totalorder %s208, %s210
      %p217 = scmp.eq.s32.totalorder %s32, 1
      %p218 = por %p216, %p217
      %p219 = scmp.ne.s32.totalorder %s210, %s211
      %p220 = scmp.eq.s32.totalorder %s32, 0
      %p221 = por %p219, %p220
      %p222 = scmp.ne.s32.totalorder %s210, %s211
      %p223 = scmp.eq.s32.totalorder %s33, 1
      %p224 = por %p222, %p223
      %p226 = scmp.ne.s32.totalorder %s211, %s225
      %p227 = scmp.eq.s32.totalorder %s33, 0
      %p228 = por %p226, %p227
      %s230 = sadd.s32 %s229, 1
      %p233 = scmp.eq.s32.totalorder %s27, 1
      %p234 = scmp.ne.s32.totalorder %s229, %s231
      %p235 = scmp.eq.s32.totalorder %s27, 0
      %p236 = por %p234, %p235
      %p237 = scmp.ne.s32.totalorder %s229, %s231
      %p238 = scmp.eq.s32.totalorder %s32, 1
      %p239 = por %p237, %p238
      %p240 = scmp.ne.s32.totalorder %s231, %s232
      %p241 = scmp.eq.s32.totalorder %s32, 0
      %p242 = por %p240, %p241
      %p243 = scmp.ne.s32.totalorder %s231, %s232
      %p244 = scmp.eq.s32.totalorder %s33, 1
      %p245 = por %p243, %p244
      %p247 = scmp.ne.s32.totalorder %s232, %s246
      %p248 = scmp.eq.s32.totalorder %s33, 0
      %p249 = por %p247, %p248
      %s251 = sadd.s32 %s250, 1
      %p254 = scmp.eq.s32.totalorder %s27, 1
      %p255 = scmp.ne.s32.totalorder %s250, %s252
      %p256 = scmp.eq.s32.totalorder %s27, 0
      %p257 = por %p255, %p256
      %p258 = scmp.ne.s32.totalorder %s250, %s252
      %p259 = scmp.eq.s32.totalorder %s32, 1
      %p260 = por %p258, %p259
      %p261 = scmp.ne.s32.totalorder %s252, %s253
      %p262 = scmp.eq.s32.totalorder %s32, 0
      %p263 = por %p261, %p262
      %p264 = scmp.ne.s32.totalorder %s252, %s253
      %p265 = scmp.eq.s32.totalorder %s33, 1
      %p266 = por %p264, %p265
      %p268 = scmp.ne.s32.totalorder %s253, %s267
      %p269 = scmp.eq.s32.totalorder %s33, 0
      %p270 = por %p268, %p269
      %s271 = ssub.s32 %s27, %s34
      %p272 = scmp.eq.s32.totalorder %s271, 0
      %s274 = sadd.s32 %s273, 1
      %s275 = scalar_select %p272, %s273, %s274
      %p278 = pneg %p272
      %p279 = scmp.eq.s32.totalorder %s27, 1
      %p280 = por %p278, %p279
      %p281 = scmp.ne.s32.totalorder %s273, %s276
      %p282 = scmp.eq.s32.totalorder %s27, 0
      %p283 = por %p281, %p282
      %p284 = scmp.ne.s32.totalorder %s273, %s276
      %p285 = scmp.eq.s32.totalorder %s32, 1
      %p286 = por %p284, %p285
      %p287 = scmp.ne.s32.totalorder %s276, %s277
      %p288 = scmp.eq.s32.totalorder %s32, 0
      %p289 = por %p287, %p288
      %p290 = scmp.ne.s32.totalorder %s276, %s277
      %p291 = scmp.eq.s32.totalorder %s33, 1
      %p292 = por %p290, %p291
      %p294 = scmp.ne.s32.totalorder %s277, %s293
      %p295 = scmp.eq.s32.totalorder %s33, 0
      %p296 = por %p294, %p295
      %p297 = scmp.le.s32.totalorder 1, %s27
      %p298 = scmp.lt.s32.totalorder %s27, 3
      %p299 = pnand %p297, %p298
      %p300 = pneg %p299
      // Predicated region
      $region9: #{contrastive_diffusion_autoencoder.1} parent=5 // pred_check
        _
      $region10: #{contrastive_diffusion_autoencoder.1} parent=5 // pred_check_branch
        %302 = sbr.rel (%p299) target = $region12
      $region11: #{contrastive_diffusion_autoencoder.1} parent=5 // pred_region
        %s303 = ssub.s32 %s27, 1
        // Predicated region
        $region13: #{contrastive_diffusion_autoencoder.1} parent=11 // pred_check
          %p304 = pneg %p74
        $region14: #{contrastive_diffusion_autoencoder.1} parent=11 // pred_check_branch
          %306 = sbr.rel (%p304) target = $region16
        $region15: #{contrastive_diffusion_autoencoder.1} parent=11 // pred_region
          %308 = vsyncadd [#allocation6], 0
          %s309 = sshll.u32 %s1, 4
          %s310 = int_to_ptr.hbm [resolvable:$true] %s309
          %s311 = sshll.u32 [#allocation5], 4
          %s312 = int_to_ptr.vmem [resolvable:$true] %s311
          %317 = dma.hbm_to_vmem [thread:$0]  %s310, 16384, %s312, [#allocation6], 128, 128, 8
        $region16: #{contrastive_diffusion_autoencoder.1} parent=11 // pred_fallthru
          _
        // Predicated region
        $region17: #{contrastive_diffusion_autoencoder.1} parent=11 // pred_check
          %p318 = pneg %p95
        $region18: #{contrastive_diffusion_autoencoder.1} parent=11 // pred_check_branch
          %320 = sbr.rel (%p318) target = $region20
        $region19: #{contrastive_diffusion_autoencoder.1} parent=11 // pred_region
          %322 = vsyncadd [#allocation6], 0
          %s324 = sshll.u32 %s2, 4
          %s325 = int_to_ptr.hbm [resolvable:$true] %s324
          %s326 = sshll.u32 [#allocation7], 4
          %s327 = int_to_ptr.vmem [resolvable:$true] %s326
          %329 = dma.hbm_to_vmem [thread:$0]  %s325, 32, %s327, [#allocation6]
        $region20: #{contrastive_diffusion_autoencoder.1} parent=11 // pred_fallthru
          _
        // Predicated region
        $region21: #{contrastive_diffusion_autoencoder.1} parent=11 // pred_check
          %p330 = pneg %p116
        $region22: #{contrastive_diffusion_autoencoder.1} parent=11 // pred_check_branch
          %332 = sbr.rel (%p330) target = $region24
        $region23: #{contrastive_diffusion_autoencoder.1} parent=11 // pred_region
          %334 = vsyncadd [#allocation9], 0
          %s335 = sshll.u32 %s3, 4
          %s336 = int_to_ptr.hbm [resolvable:$true] %s335
          %s337 = sshll.u32 [#allocation8], 4
          %s338 = int_to_ptr.vmem [resolvable:$true] %s337
          %343 = dma.hbm_to_vmem [thread:$0]  %s336, 2048, %s338, [#allocation9], 64, 64, 4
        $region24: #{contrastive_diffusion_autoencoder.1} parent=11 // pred_fallthru
          _
        // Predicated region
        $region25: #{contrastive_diffusion_autoencoder.1} parent=11 // pred_check
          %p344 = pneg %p137
        $region26: #{contrastive_diffusion_autoencoder.1} parent=11 // pred_check_branch
          %346 = sbr.rel (%p344) target = $region28
        $region27: #{contrastive_diffusion_autoencoder.1} parent=11 // pred_region
          %348 = vsyncadd [#allocation9], 0
          %s350 = sshll.u32 %s4, 4
          %s351 = int_to_ptr.hbm [resolvable:$true] %s350
          %s352 = sshll.u32 [#allocation10], 4
          %s353 = int_to_ptr.vmem [resolvable:$true] %s352
          %355 = dma.hbm_to_vmem [thread:$0]  %s351, 16, %s353, [#allocation9]
        $region28: #{contrastive_diffusion_autoencoder.1} parent=11 // pred_fallthru
          _
        // Predicated region
        $region29: #{contrastive_diffusion_autoencoder.1} parent=11 // pred_check
          %p356 = pneg %p158
        $region30: #{contrastive_diffusion_autoencoder.1} parent=11 // pred_check_branch
          %358 = sbr.rel (%p356) target = $region32
        $region31: #{contrastive_diffusion_autoencoder.1} parent=11 // pred_region
          %360 = vsyncadd [#allocation12], 0
          %s361 = sshll.u32 %s5, 4
          %s362 = int_to_ptr.hbm [resolvable:$true] %s361
          %s363 = sshll.u32 [#allocation11], 4
          %s364 = int_to_ptr.vmem [resolvable:$true] %s363
          %369 = dma.hbm_to_vmem [thread:$0]  %s362, 1024, %s364, [#allocation12], 64, 64, 4
        $region32: #{contrastive_diffusion_autoencoder.1} parent=11 // pred_fallthru
          _
        // Predicated region
        $region33: #{contrastive_diffusion_autoencoder.1} parent=11 // pred_check
          %p370 = pneg %p179
        $region34: #{contrastive_diffusion_autoencoder.1} parent=11 // pred_check_branch
          %372 = sbr.rel (%p370) target = $region36
        $region35: #{contrastive_diffusion_autoencoder.1} parent=11 // pred_region
          _
        $region36: #{contrastive_diffusion_autoencoder.1} parent=11 // pred_fallthru
          _
        // Predicated region
        $region37: #{contrastive_diffusion_autoencoder.1} parent=11 // pred_check
          %p373 = pneg %p200
        $region38: #{contrastive_diffusion_autoencoder.1} parent=11 // pred_check_branch
          %375 = sbr.rel (%p373) target = $region40
        $region39: #{contrastive_diffusion_autoencoder.1} parent=11 // pred_region
          %377 = vsyncadd [#allocation12], 0
          %s378 = sshll.u32 %s7, 4
          %s379 = int_to_ptr.hbm [resolvable:$true] %s378
          %s380 = sshll.u32 [#allocation13], 4
          %s381 = int_to_ptr.vmem [resolvable:$true] %s380
          %386 = dma.hbm_to_vmem [thread:$0]  %s379, 2048, %s381, [#allocation12], 128, 128, 8
        $region40: #{contrastive_diffusion_autoencoder.1} parent=11 // pred_fallthru
          _
        // Predicated region
        $region41: #{contrastive_diffusion_autoencoder.1} parent=11 // pred_check
          %p387 = pneg %p221
        $region42: #{contrastive_diffusion_autoencoder.1} parent=11 // pred_check_branch
          %389 = sbr.rel (%p387) target = $region44
        $region43: #{contrastive_diffusion_autoencoder.1} parent=11 // pred_region
          _
        $region44: #{contrastive_diffusion_autoencoder.1} parent=11 // pred_fallthru
          _
        // Predicated region
        $region45: #{contrastive_diffusion_autoencoder.1} parent=11 // pred_check
          %p390 = pneg %p242
        $region46: #{contrastive_diffusion_autoencoder.1} parent=11 // pred_check_branch
          %392 = sbr.rel (%p390) target = $region48
        $region47: #{contrastive_diffusion_autoencoder.1} parent=11 // pred_region
          %394 = vsyncadd [#allocation15], 0
          %s395 = sshll.u32 %s9, 4
          %s396 = int_to_ptr.hbm [resolvable:$true] %s395
          %s397 = sshll.u32 [#allocation14], 4
          %s398 = int_to_ptr.vmem [resolvable:$true] %s397
          %403 = dma.hbm_to_vmem [thread:$0]  %s396, 16384, %s398, [#allocation15], 512, 512, 32
        $region48: #{contrastive_diffusion_autoencoder.1} parent=11 // pred_fallthru
          _
        // Predicated region
        $region49: #{contrastive_diffusion_autoencoder.1} parent=11 // pred_check
          %p404 = pneg %p263
        $region50: #{contrastive_diffusion_autoencoder.1} parent=11 // pred_check_branch
          %406 = sbr.rel (%p404) target = $region52
        $region51: #{contrastive_diffusion_autoencoder.1} parent=11 // pred_region
          %408 = vsyncadd [#allocation15], 0
          %s410 = sshll.u32 %s10, 4
          %s411 = int_to_ptr.hbm [resolvable:$true] %s410
          %s412 = sshll.u32 [#allocation16], 4
          %s413 = int_to_ptr.vmem [resolvable:$true] %s412
          %415 = dma.hbm_to_vmem [thread:$0]  %s411, 128, %s413, [#allocation15]
        $region52: #{contrastive_diffusion_autoencoder.1} parent=11 // pred_fallthru
          _
      $region12: #{contrastive_diffusion_autoencoder.1} parent=5 // pred_fallthru
        _
      %p416 = scmp.lt.s32.totalorder %s27, 2
      // Predicated region
      $region53: #{contrastive_diffusion_autoencoder.1} parent=5 // pred_check
        %p417 = pneg %p416
      $region54: #{contrastive_diffusion_autoencoder.1} parent=5 // pred_check_branch
        %419 = sbr.rel (%p417) target = $region56
      $region55: #{contrastive_diffusion_autoencoder.1} parent=5 // pred_region
        // Predicated region
        $region57: #{contrastive_diffusion_autoencoder.1} parent=55 // pred_check
          %p420 = pneg %p47
        $region58: #{contrastive_diffusion_autoencoder.1} parent=55 // pred_check_branch
          %422 = sbr.rel (%p420) target = $region60
        $region59: #{contrastive_diffusion_autoencoder.1} parent=55 // pred_region
          %s423 = sand.u32 %s37, 1
          %s424 = scalar_lea.sflag [#allocation3], %s423
          %s425 = sand.u32 %s37, 1
          %s426 = smul.addr %s425, 256
          %s427 = scalar_lea.vmem [#allocation2], %s426
          %s428 = smul.u32 4, %s27
          %430 = vsyncadd %s424, 0
          %s431 = smul.addr %s428, 8
          %s432 = smul.addr %s431, 8
          %s433 = scalar_lea.hbm %s0, %s432
          %s434 = sshll.u32 %s433, 4
          %s435 = int_to_ptr.hbm [resolvable:$true] %s434
          %s436 = sshll.u32 %s427, 4
          %s437 = int_to_ptr.vmem [resolvable:$true] %s436
          %442 = dma.hbm_to_vmem [thread:$0]  %s435, 4096, %s437, %s424, 1024, 1024, 64
        $region60: #{contrastive_diffusion_autoencoder.1} parent=55 // pred_fallthru
          _
      $region56: #{contrastive_diffusion_autoencoder.1} parent=5 // pred_fallthru
        _
      %p443 = scmp.le.s32.totalorder 1, %s27
      %p444 = scmp.lt.s32.totalorder %s27, 3
      %p445 = pnand %p443, %p444
      %p446 = pneg %p445
      // Predicated region
      $region61: #{contrastive_diffusion_autoencoder.1} parent=5 // pred_check
        _
      $region62: #{contrastive_diffusion_autoencoder.1} parent=5 // pred_check_branch
        %448 = sbr.rel (%p445) target = $region64
      $region63: #{contrastive_diffusion_autoencoder.1} parent=5 // pred_region
        %s449 = ssub.s32 %s27, 1
        %s450 = sand.u32 %s40, 1
        %s451 = scalar_lea.sflag [#allocation3], %s450
        %s452 = sand.u32 %s40, 1
        %s453 = smul.addr %s452, 256
        %s454 = scalar_lea.vmem [#allocation2], %s453
        // Predicated region
        $region65: #{contrastive_diffusion_autoencoder.1} parent=63 // pred_check
          %p455 = pneg %p53
        $region66: #{contrastive_diffusion_autoencoder.1} parent=63 // pred_check_branch
          %457 = sbr.rel (%p455) target = $region68
        $region67: #{contrastive_diffusion_autoencoder.1} parent=63 // pred_region
          %459 = dma.done %s451, 4096
        $region68: #{contrastive_diffusion_autoencoder.1} parent=63 // pred_fallthru
          _
        // Predicated region
        $region69: #{contrastive_diffusion_autoencoder.1} parent=63 // pred_check
          %p460 = pneg %p74
        $region70: #{contrastive_diffusion_autoencoder.1} parent=63 // pred_check_branch
          %462 = sbr.rel (%p460) target = $region72
        $region71: #{contrastive_diffusion_autoencoder.1} parent=63 // pred_region
          %464 = dma.done [#allocation6], 16384
        $region72: #{contrastive_diffusion_autoencoder.1} parent=63 // pred_fallthru
          _
        // Predicated region
        $region73: #{contrastive_diffusion_autoencoder.1} parent=63 // pred_check
          %p465 = pneg %p95
        $region74: #{contrastive_diffusion_autoencoder.1} parent=63 // pred_check_branch
          %467 = sbr.rel (%p465) target = $region76
        $region75: #{contrastive_diffusion_autoencoder.1} parent=63 // pred_region
          %469 = dma.done [#allocation6], 32
        $region76: #{contrastive_diffusion_autoencoder.1} parent=63 // pred_fallthru
          _
        // Predicated region
        $region77: #{contrastive_diffusion_autoencoder.1} parent=63 // pred_check
          %p470 = pneg %p116
        $region78: #{contrastive_diffusion_autoencoder.1} parent=63 // pred_check_branch
          %472 = sbr.rel (%p470) target = $region80
        $region79: #{contrastive_diffusion_autoencoder.1} parent=63 // pred_region
          %474 = dma.done [#allocation9], 2048
        $region80: #{contrastive_diffusion_autoencoder.1} parent=63 // pred_fallthru
          _
        // Predicated region
        $region81: #{contrastive_diffusion_autoencoder.1} parent=63 // pred_check
          %p475 = pneg %p137
        $region82: #{contrastive_diffusion_autoencoder.1} parent=63 // pred_check_branch
          %477 = sbr.rel (%p475) target = $region84
        $region83: #{contrastive_diffusion_autoencoder.1} parent=63 // pred_region
          %479 = dma.done [#allocation9], 16
        $region84: #{contrastive_diffusion_autoencoder.1} parent=63 // pred_fallthru
          _
        // Predicated region
        $region85: #{contrastive_diffusion_autoencoder.1} parent=63 // pred_check
          %p480 = pneg %p158
        $region86: #{contrastive_diffusion_autoencoder.1} parent=63 // pred_check_branch
          %482 = sbr.rel (%p480) target = $region88
        $region87: #{contrastive_diffusion_autoencoder.1} parent=63 // pred_region
          %484 = dma.done [#allocation12], 1024
        $region88: #{contrastive_diffusion_autoencoder.1} parent=63 // pred_fallthru
          _
        // Predicated region
        $region89: #{contrastive_diffusion_autoencoder.1} parent=63 // pred_check
          %p485 = pneg %p200
        $region90: #{contrastive_diffusion_autoencoder.1} parent=63 // pred_check_branch
          %487 = sbr.rel (%p485) target = $region92
        $region91: #{contrastive_diffusion_autoencoder.1} parent=63 // pred_region
          %489 = dma.done [#allocation12], 2048
        $region92: #{contrastive_diffusion_autoencoder.1} parent=63 // pred_fallthru
          _
        // Predicated region
        $region93: #{contrastive_diffusion_autoencoder.1} parent=63 // pred_check
          %p490 = pneg %p242
        $region94: #{contrastive_diffusion_autoencoder.1} parent=63 // pred_check_branch
          %492 = sbr.rel (%p490) target = $region96
        $region95: #{contrastive_diffusion_autoencoder.1} parent=63 // pred_region
          %494 = dma.done [#allocation15], 16384
        $region96: #{contrastive_diffusion_autoencoder.1} parent=63 // pred_fallthru
          _
        // Predicated region
        $region97: #{contrastive_diffusion_autoencoder.1} parent=63 // pred_check
          %p495 = pneg %p263
        $region98: #{contrastive_diffusion_autoencoder.1} parent=63 // pred_check_branch
          %497 = sbr.rel (%p495) target = $region100
        $region99: #{contrastive_diffusion_autoencoder.1} parent=63 // pred_region
          %499 = dma.done [#allocation15], 128
        $region100: #{contrastive_diffusion_autoencoder.1} parent=63 // pred_fallthru
          _
        %s500 = sand.u32 %s40, 1
        %s501 = scalar_lea.sflag [#allocation3], %s500
        %s502 = sand.u32 %s40, 1
        %s503 = smul.addr %s502, 256
        %s504 = scalar_lea.vmem [#allocation2], %s503
        %p505 = pneg %p53
        %p506 = pneg %p50
        %p507 = pneg %p74
        %p508 = pneg %p71
        %p509 = pneg %p95
        %p510 = pneg %p92
        %p511 = pneg %p116
        %p512 = pneg %p113
        %p513 = pneg %p137
        %p514 = pneg %p134
        %p515 = pneg %p158
        %p516 = pneg %p155
        %p517 = pneg %p179
        %p518 = pneg %p176
        %p519 = pneg %p200
        %p520 = pneg %p197
        %p521 = pneg %p221
        %p522 = pneg %p218
        %p523 = pneg %p242
        %p524 = pneg %p239
        %p525 = pneg %p263
        %p526 = pneg %p260
        %p527 = pneg %p289
        %p528 = pneg %p286
        %s529 = sand.u32 %s276, 1
        %s530 = scalar_lea.sflag [#allocation4], %s529
        %s531 = sand.u32 %s276, 1
        %s532 = smul.addr %s531, 256
        %s533 = scalar_lea.vmem [#allocation17], %s532
        %s534 = smul.u32 4, %s32
        %s535 = smul.u32 4, %s32
        %v536 = vld [vmem:[%s454] sm:$0xff]
        %v537 = vld [vmem:[%s454 + $0x8] sm:$0xff]
        %v538 = vld [vmem:[%s454 + $0x10] sm:$0xff]
        %v539 = vld [vmem:[%s454 + $0x18] sm:$0xff]
        %v540 = vld [vmem:[%s454 + $0x20] sm:$0xff]
        %v541 = vld [vmem:[%s454 + $0x28] sm:$0xff]
        %v542 = vld [vmem:[%s454 + $0x30] sm:$0xff]
        %v543 = vld [vmem:[%s454 + $0x38] sm:$0xff]
        %v544 = vld [vmem:[%s454 + $0x40] sm:$0xff]
        %v545 = vld [vmem:[%s454 + $0x48] sm:$0xff]
        %v546 = vld [vmem:[%s454 + $0x50] sm:$0xff]
        %v547 = vld [vmem:[%s454 + $0x58] sm:$0xff]
        %v548 = vld [vmem:[%s454 + $0x60] sm:$0xff]
        %v549 = vld [vmem:[%s454 + $0x68] sm:$0xff]
        %v550 = vld [vmem:[%s454 + $0x70] sm:$0xff]
        %v551 = vld [vmem:[%s454 + $0x78] sm:$0xff]
        %v552 = vld [vmem:[%s454 + $0x80] sm:$0xff]
        %v553 = vld [vmem:[%s454 + $0x88] sm:$0xff]
        %v554 = vld [vmem:[%s454 + $0x90] sm:$0xff]
        %v555 = vld [vmem:[%s454 + $0x98] sm:$0xff]
        %v556 = vld [vmem:[%s454 + $0xa0] sm:$0xff]
        %v557 = vld [vmem:[%s454 + $0xa8] sm:$0xff]
        %v558 = vld [vmem:[%s454 + $0xb0] sm:$0xff]
        %v559 = vld [vmem:[%s454 + $0xb8] sm:$0xff]
        %v560 = vld [vmem:[%s454 + $0xc0] sm:$0xff]
        %v561 = vld [vmem:[%s454 + $0xc8] sm:$0xff]
        %v562 = vld [vmem:[%s454 + $0xd0] sm:$0xff]
        %v563 = vld [vmem:[%s454 + $0xd8] sm:$0xff]
        %v564 = vld [vmem:[%s454 + $0xe0] sm:$0xff]
        %v565 = vld [vmem:[%s454 + $0xe8] sm:$0xff]
        %v566 = vld [vmem:[%s454 + $0xf0] sm:$0xff]
        %v567 = vld [vmem:[%s454 + $0xf8] sm:$0xff]
        %v568 = vpack.c.bf16 %v544, %v536
        %v569 = vpack.c.bf16 %v545, %v537
        %v570 = vpack.c.bf16 %v546, %v538
        %v571 = vpack.c.bf16 %v547, %v539
        %v572 = vpack.c.bf16 %v548, %v540
        %v573 = vpack.c.bf16 %v549, %v541
        %v574 = vpack.c.bf16 %v550, %v542
        %v575 = vpack.c.bf16 %v551, %v543
        %v576 = vpack.c.bf16 %v560, %v552
        %v577 = vpack.c.bf16 %v561, %v553
        %v578 = vpack.c.bf16 %v562, %v554
        %v579 = vpack.c.bf16 %v563, %v555
        %v580 = vpack.c.bf16 %v564, %v556
        %v581 = vpack.c.bf16 %v565, %v557
        %v582 = vpack.c.bf16 %v566, %v558
        %v583 = vpack.c.bf16 %v567, %v559
        %v584 = vld [vmem:[#allocation5] sm:$0xff]
        %v585 = vld [vmem:[#allocation5 + $0x8] sm:$0xff]
        %v586 = vld [vmem:[#allocation5 + $0x10] sm:$0xff]
        %v587 = vld [vmem:[#allocation5 + $0x18] sm:$0xff]
        %v588 = vld [vmem:[#allocation5 + $0x20] sm:$0xff]
        %v589 = vld [vmem:[#allocation5 + $0x28] sm:$0xff]
        %v590 = vld [vmem:[#allocation5 + $0x30] sm:$0xff]
        %v591 = vld [vmem:[#allocation5 + $0x38] sm:$0xff]
        %v592 = vld [vmem:[#allocation5 + $0x40] sm:$0xff]
        %v593 = vld [vmem:[#allocation5 + $0x48] sm:$0xff]
        %v594 = vld [vmem:[#allocation5 + $0x50] sm:$0xff]
        %v595 = vld [vmem:[#allocation5 + $0x58] sm:$0xff]
        %v596 = vld [vmem:[#allocation5 + $0x60] sm:$0xff]
        %v597 = vld [vmem:[#allocation5 + $0x68] sm:$0xff]
        %v598 = vld [vmem:[#allocation5 + $0x70] sm:$0xff]
        %v599 = vld [vmem:[#allocation5 + $0x78] sm:$0xff]
        %v600 = vld [vmem:[#allocation5 + $0x80] sm:$0xff]
        %v601 = vld [vmem:[#allocation5 + $0x88] sm:$0xff]
        %v602 = vld [vmem:[#allocation5 + $0x90] sm:$0xff]
        %v603 = vld [vmem:[#allocation5 + $0x98] sm:$0xff]
        %v604 = vld [vmem:[#allocation5 + $0xa0] sm:$0xff]
        %v605 = vld [vmem:[#allocation5 + $0xa8] sm:$0xff]
        %v606 = vld [vmem:[#allocation5 + $0xb0] sm:$0xff]
        %v607 = vld [vmem:[#allocation5 + $0xb8] sm:$0xff]
        %v608 = vld [vmem:[#allocation5 + $0xc0] sm:$0xff]
        %v609 = vld [vmem:[#allocation5 + $0xc8] sm:$0xff]
        %v610 = vld [vmem:[#allocation5 + $0xd0] sm:$0xff]
        %v611 = vld [vmem:[#allocation5 + $0xd8] sm:$0xff]
        %v612 = vld [vmem:[#allocation5 + $0xe0] sm:$0xff]
        %v613 = vld [vmem:[#allocation5 + $0xe8] sm:$0xff]
        %v614 = vld [vmem:[#allocation5 + $0xf0] sm:$0xff]
        %v615 = vld [vmem:[#allocation5 + $0xf8] sm:$0xff]
        %v616 = vld [vmem:[#allocation5 + $0x100] sm:$0xff]
        %v617 = vld [vmem:[#allocation5 + $0x108] sm:$0xff]
        %v618 = vld [vmem:[#allocation5 + $0x110] sm:$0xff]
        %v619 = vld [vmem:[#allocation5 + $0x118] sm:$0xff]
        %v620 = vld [vmem:[#allocation5 + $0x120] sm:$0xff]
        %v621 = vld [vmem:[#allocation5 + $0x128] sm:$0xff]
        %v622 = vld [vmem:[#allocation5 + $0x130] sm:$0xff]
        %v623 = vld [vmem:[#allocation5 + $0x138] sm:$0xff]
        %v624 = vld [vmem:[#allocation5 + $0x140] sm:$0xff]
        %v625 = vld [vmem:[#allocation5 + $0x148] sm:$0xff]
        %v626 = vld [vmem:[#allocation5 + $0x150] sm:$0xff]
        %v627 = vld [vmem:[#allocation5 + $0x158] sm:$0xff]
        %v628 = vld [vmem:[#allocation5 + $0x160] sm:$0xff]
        %v629 = vld [vmem:[#allocation5 + $0x168] sm:$0xff]
        %v630 = vld [vmem:[#allocation5 + $0x170] sm:$0xff]
        %v631 = vld [vmem:[#allocation5 + $0x178] sm:$0xff]
        %v632 = vld [vmem:[#allocation5 + $0x180] sm:$0xff]
        %v633 = vld [vmem:[#allocation5 + $0x188] sm:$0xff]
        %v634 = vld [vmem:[#allocation5 + $0x190] sm:$0xff]
        %v635 = vld [vmem:[#allocation5 + $0x198] sm:$0xff]
        %v636 = vld [vmem:[#allocation5 + $0x1a0] sm:$0xff]
        %v637 = vld [vmem:[#allocation5 + $0x1a8] sm:$0xff]
        %v638 = vld [vmem:[#allocation5 + $0x1b0] sm:$0xff]
        %v639 = vld [vmem:[#allocation5 + $0x1b8] sm:$0xff]
        %v640 = vld [vmem:[#allocation5 + $0x1c0] sm:$0xff]
        %v641 = vld [vmem:[#allocation5 + $0x1c8] sm:$0xff]
        %v642 = vld [vmem:[#allocation5 + $0x1d0] sm:$0xff]
        %v643 = vld [vmem:[#allocation5 + $0x1d8] sm:$0xff]
        %v644 = vld [vmem:[#allocation5 + $0x1e0] sm:$0xff]
        %v645 = vld [vmem:[#allocation5 + $0x1e8] sm:$0xff]
        %v646 = vld [vmem:[#allocation5 + $0x1f0] sm:$0xff]
        %v647 = vld [vmem:[#allocation5 + $0x1f8] sm:$0xff]
        %v648 = vld [vmem:[#allocation5 + $0x200] sm:$0xff]
        %v649 = vld [vmem:[#allocation5 + $0x208] sm:$0xff]
        %v650 = vld [vmem:[#allocation5 + $0x210] sm:$0xff]
        %v651 = vld [vmem:[#allocation5 + $0x218] sm:$0xff]
        %v652 = vld [vmem:[#allocation5 + $0x220] sm:$0xff]
        %v653 = vld [vmem:[#allocation5 + $0x228] sm:$0xff]
        %v654 = vld [vmem:[#allocation5 + $0x230] sm:$0xff]
        %v655 = vld [vmem:[#allocation5 + $0x238] sm:$0xff]
        %v656 = vld [vmem:[#allocation5 + $0x240] sm:$0xff]
        %v657 = vld [vmem:[#allocation5 + $0x248] sm:$0xff]
        %v658 = vld [vmem:[#allocation5 + $0x250] sm:$0xff]
        %v659 = vld [vmem:[#allocation5 + $0x258] sm:$0xff]
        %v660 = vld [vmem:[#allocation5 + $0x260] sm:$0xff]
        %v661 = vld [vmem:[#allocation5 + $0x268] sm:$0xff]
        %v662 = vld [vmem:[#allocation5 + $0x270] sm:$0xff]
        %v663 = vld [vmem:[#allocation5 + $0x278] sm:$0xff]
        %v664 = vld [vmem:[#allocation5 + $0x280] sm:$0xff]
        %v665 = vld [vmem:[#allocation5 + $0x288] sm:$0xff]
        %v666 = vld [vmem:[#allocation5 + $0x290] sm:$0xff]
        %v667 = vld [vmem:[#allocation5 + $0x298] sm:$0xff]
        %v668 = vld [vmem:[#allocation5 + $0x2a0] sm:$0xff]
        %v669 = vld [vmem:[#allocation5 + $0x2a8] sm:$0xff]
        %v670 = vld [vmem:[#allocation5 + $0x2b0] sm:$0xff]
        %v671 = vld [vmem:[#allocation5 + $0x2b8] sm:$0xff]
        %v672 = vld [vmem:[#allocation5 + $0x2c0] sm:$0xff]
        %v673 = vld [vmem:[#allocation5 + $0x2c8] sm:$0xff]
        %v674 = vld [vmem:[#allocation5 + $0x2d0] sm:$0xff]
        %v675 = vld [vmem:[#allocation5 + $0x2d8] sm:$0xff]
        %v676 = vld [vmem:[#allocation5 + $0x2e0] sm:$0xff]
        %v677 = vld [vmem:[#allocation5 + $0x2e8] sm:$0xff]
        %v678 = vld [vmem:[#allocation5 + $0x2f0] sm:$0xff]
        %v679 = vld [vmem:[#allocation5 + $0x2f8] sm:$0xff]
        %v680 = vld [vmem:[#allocation5 + $0x300] sm:$0xff]
        %v681 = vld [vmem:[#allocation5 + $0x308] sm:$0xff]
        %v682 = vld [vmem:[#allocation5 + $0x310] sm:$0xff]
        %v683 = vld [vmem:[#allocation5 + $0x318] sm:$0xff]
        %v684 = vld [vmem:[#allocation5 + $0x320] sm:$0xff]
        %v685 = vld [vmem:[#allocation5 + $0x328] sm:$0xff]
        %v686 = vld [vmem:[#allocation5 + $0x330] sm:$0xff]
        %v687 = vld [vmem:[#allocation5 + $0x338] sm:$0xff]
        %v688 = vld [vmem:[#allocation5 + $0x340] sm:$0xff]
        %v689 = vld [vmem:[#allocation5 + $0x348] sm:$0xff]
        %v690 = vld [vmem:[#allocation5 + $0x350] sm:$0xff]
        %v691 = vld [vmem:[#allocation5 + $0x358] sm:$0xff]
        %v692 = vld [vmem:[#allocation5 + $0x360] sm:$0xff]
        %v693 = vld [vmem:[#allocation5 + $0x368] sm:$0xff]
        %v694 = vld [vmem:[#allocation5 + $0x370] sm:$0xff]
        %v695 = vld [vmem:[#allocation5 + $0x378] sm:$0xff]
        %v696 = vld [vmem:[#allocation5 + $0x380] sm:$0xff]
        %v697 = vld [vmem:[#allocation5 + $0x388] sm:$0xff]
        %v698 = vld [vmem:[#allocation5 + $0x390] sm:$0xff]
        %v699 = vld [vmem:[#allocation5 + $0x398] sm:$0xff]
        %v700 = vld [vmem:[#allocation5 + $0x3a0] sm:$0xff]
        %v701 = vld [vmem:[#allocation5 + $0x3a8] sm:$0xff]
        %v702 = vld [vmem:[#allocation5 + $0x3b0] sm:$0xff]
        %v703 = vld [vmem:[#allocation5 + $0x3b8] sm:$0xff]
        %v704 = vld [vmem:[#allocation5 + $0x3c0] sm:$0xff]
        %v705 = vld [vmem:[#allocation5 + $0x3c8] sm:$0xff]
        %v706 = vld [vmem:[#allocation5 + $0x3d0] sm:$0xff]
        %v707 = vld [vmem:[#allocation5 + $0x3d8] sm:$0xff]
        %v708 = vld [vmem:[#allocation5 + $0x3e0] sm:$0xff]
        %v709 = vld [vmem:[#allocation5 + $0x3e8] sm:$0xff]
        %v710 = vld [vmem:[#allocation5 + $0x3f0] sm:$0xff]
        %v711 = vld [vmem:[#allocation5 + $0x3f8] sm:$0xff]
        %v712 = vld [vmem:[#allocation7] sm:$0x3]
        %v714 = vperm.slane %v712, 0
        %v715 = vperm.slane %v712, 1
        %v846 = vunpack.c.l.b16 %v584
        %v847 = vunpack.c.h.b16 %v584
        %v848 = vunpack.c.l.b16 %v585
        %v849 = vunpack.c.h.b16 %v585
        %v850 = vunpack.c.l.b16 %v586
        %v851 = vunpack.c.h.b16 %v586
        %v852 = vunpack.c.l.b16 %v587
        %v853 = vunpack.c.h.b16 %v587
        %v854 = vunpack.c.l.b16 %v588
        %v855 = vunpack.c.h.b16 %v588
        %v856 = vunpack.c.l.b16 %v589
        %v857 = vunpack.c.h.b16 %v589
        %v858 = vunpack.c.l.b16 %v590
        %v859 = vunpack.c.h.b16 %v590
        %v860 = vunpack.c.l.b16 %v591
        %v861 = vunpack.c.h.b16 %v591
        %v862 = vunpack.c.l.b16 %v592
        %v863 = vunpack.c.h.b16 %v592
        %v864 = vunpack.c.l.b16 %v593
        %v865 = vunpack.c.h.b16 %v593
        %v866 = vunpack.c.l.b16 %v594
        %v867 = vunpack.c.h.b16 %v594
        %v868 = vunpack.c.l.b16 %v595
        %v869 = vunpack.c.h.b16 %v595
        %v870 = vunpack.c.l.b16 %v596
        %v871 = vunpack.c.h.b16 %v596
        %v872 = vunpack.c.l.b16 %v597
        %v873 = vunpack.c.h.b16 %v597
        %v874 = vunpack.c.l.b16 %v598
        %v875 = vunpack.c.h.b16 %v598
        %v876 = vunpack.c.l.b16 %v599
        %v877 = vunpack.c.h.b16 %v599
        %v878 = vunpack.c.l.b16 %v600
        %v879 = vunpack.c.h.b16 %v600
        %v880 = vunpack.c.l.b16 %v601
        %v881 = vunpack.c.h.b16 %v601
        %v882 = vunpack.c.l.b16 %v602
        %v883 = vunpack.c.h.b16 %v602
        %v884 = vunpack.c.l.b16 %v603
        %v885 = vunpack.c.h.b16 %v603
        %v886 = vunpack.c.l.b16 %v604
        %v887 = vunpack.c.h.b16 %v604
        %v888 = vunpack.c.l.b16 %v605
        %v889 = vunpack.c.h.b16 %v605
        %v890 = vunpack.c.l.b16 %v606
        %v891 = vunpack.c.h.b16 %v606
        %v892 = vunpack.c.l.b16 %v607
        %v893 = vunpack.c.h.b16 %v607
        %v894 = vunpack.c.l.b16 %v608
        %v895 = vunpack.c.h.b16 %v608
        %v896 = vunpack.c.l.b16 %v609
        %v897 = vunpack.c.h.b16 %v609
        %v898 = vunpack.c.l.b16 %v610
        %v899 = vunpack.c.h.b16 %v610
        %v900 = vunpack.c.l.b16 %v611
        %v901 = vunpack.c.h.b16 %v611
        %v902 = vunpack.c.l.b16 %v612
        %v903 = vunpack.c.h.b16 %v612
        %v904 = vunpack.c.l.b16 %v613
        %v905 = vunpack.c.h.b16 %v613
        %v906 = vunpack.c.l.b16 %v614
        %v907 = vunpack.c.h.b16 %v614
        %v908 = vunpack.c.l.b16 %v615
        %v909 = vunpack.c.h.b16 %v615
        %v910 = vunpack.c.l.b16 %v616
        %v911 = vunpack.c.h.b16 %v616
        %v912 = vunpack.c.l.b16 %v617
        %v913 = vunpack.c.h.b16 %v617
        %v914 = vunpack.c.l.b16 %v618
        %v915 = vunpack.c.h.b16 %v618
        %v916 = vunpack.c.l.b16 %v619
        %v917 = vunpack.c.h.b16 %v619
        %v918 = vunpack.c.l.b16 %v620
        %v919 = vunpack.c.h.b16 %v620
        %v920 = vunpack.c.l.b16 %v621
        %v921 = vunpack.c.h.b16 %v621
        %v922 = vunpack.c.l.b16 %v622
        %v923 = vunpack.c.h.b16 %v622
        %v924 = vunpack.c.l.b16 %v623
        %v925 = vunpack.c.h.b16 %v623
        %v926 = vunpack.c.l.b16 %v624
        %v927 = vunpack.c.h.b16 %v624
        %v928 = vunpack.c.l.b16 %v625
        %v929 = vunpack.c.h.b16 %v625
        %v930 = vunpack.c.l.b16 %v626
        %v931 = vunpack.c.h.b16 %v626
        %v932 = vunpack.c.l.b16 %v627
        %v933 = vunpack.c.h.b16 %v627
        %v934 = vunpack.c.l.b16 %v628
        %v935 = vunpack.c.h.b16 %v628
        %v936 = vunpack.c.l.b16 %v629
        %v937 = vunpack.c.h.b16 %v629
        %v938 = vunpack.c.l.b16 %v630
        %v939 = vunpack.c.h.b16 %v630
        %v940 = vunpack.c.l.b16 %v631
        %v941 = vunpack.c.h.b16 %v631
        %v942 = vunpack.c.l.b16 %v632
        %v943 = vunpack.c.h.b16 %v632
        %v944 = vunpack.c.l.b16 %v633
        %v945 = vunpack.c.h.b16 %v633
        %v946 = vunpack.c.l.b16 %v634
        %v947 = vunpack.c.h.b16 %v634
        %v948 = vunpack.c.l.b16 %v635
        %v949 = vunpack.c.h.b16 %v635
        %v950 = vunpack.c.l.b16 %v636
        %v951 = vunpack.c.h.b16 %v636
        %v952 = vunpack.c.l.b16 %v637
        %v953 = vunpack.c.h.b16 %v637
        %v954 = vunpack.c.l.b16 %v638
        %v955 = vunpack.c.h.b16 %v638
        %v956 = vunpack.c.l.b16 %v639
        %v957 = vunpack.c.h.b16 %v639
        %v958 = vunpack.c.l.b16 %v640
        %v959 = vunpack.c.h.b16 %v640
        %v960 = vunpack.c.l.b16 %v641
        %v961 = vunpack.c.h.b16 %v641
        %v962 = vunpack.c.l.b16 %v642
        %v963 = vunpack.c.h.b16 %v642
        %v964 = vunpack.c.l.b16 %v643
        %v965 = vunpack.c.h.b16 %v643
        %v966 = vunpack.c.l.b16 %v644
        %v967 = vunpack.c.h.b16 %v644
        %v968 = vunpack.c.l.b16 %v645
        %v969 = vunpack.c.h.b16 %v645
        %v970 = vunpack.c.l.b16 %v646
        %v971 = vunpack.c.h.b16 %v646
        %v972 = vunpack.c.l.b16 %v647
        %v973 = vunpack.c.h.b16 %v647
        %v974 = vunpack.c.l.b16 %v648
        %v975 = vunpack.c.h.b16 %v648
        %v976 = vunpack.c.l.b16 %v649
        %v977 = vunpack.c.h.b16 %v649
        %v978 = vunpack.c.l.b16 %v650
        %v979 = vunpack.c.h.b16 %v650
        %v980 = vunpack.c.l.b16 %v651
        %v981 = vunpack.c.h.b16 %v651
        %v982 = vunpack.c.l.b16 %v652
        %v983 = vunpack.c.h.b16 %v652
        %v984 = vunpack.c.l.b16 %v653
        %v985 = vunpack.c.h.b16 %v653
        %v986 = vunpack.c.l.b16 %v654
        %v987 = vunpack.c.h.b16 %v654
        %v988 = vunpack.c.l.b16 %v655
        %v989 = vunpack.c.h.b16 %v655
        %v990 = vunpack.c.l.b16 %v656
        %v991 = vunpack.c.h.b16 %v656
        %v992 = vunpack.c.l.b16 %v657
        %v993 = vunpack.c.h.b16 %v657
        %v994 = vunpack.c.l.b16 %v658
        %v995 = vunpack.c.h.b16 %v658
        %v996 = vunpack.c.l.b16 %v659
        %v997 = vunpack.c.h.b16 %v659
        %v998 = vunpack.c.l.b16 %v660
        %v999 = vunpack.c.h.b16 %v660
        %v1000 = vunpack.c.l.b16 %v661
        %v1001 = vunpack.c.h.b16 %v661
        %v1002 = vunpack.c.l.b16 %v662
        %v1003 = vunpack.c.h.b16 %v662
        %v1004 = vunpack.c.l.b16 %v663
        %v1005 = vunpack.c.h.b16 %v663
        %v1006 = vunpack.c.l.b16 %v664
        %v1007 = vunpack.c.h.b16 %v664
        %v1008 = vunpack.c.l.b16 %v665
        %v1009 = vunpack.c.h.b16 %v665
        %v1010 = vunpack.c.l.b16 %v666
        %v1011 = vunpack.c.h.b16 %v666
        %v1012 = vunpack.c.l.b16 %v667
        %v1013 = vunpack.c.h.b16 %v667
        %v1014 = vunpack.c.l.b16 %v668
        %v1015 = vunpack.c.h.b16 %v668
        %v1016 = vunpack.c.l.b16 %v669
        %v1017 = vunpack.c.h.b16 %v669
        %v1018 = vunpack.c.l.b16 %v670
        %v1019 = vunpack.c.h.b16 %v670
        %v1020 = vunpack.c.l.b16 %v671
        %v1021 = vunpack.c.h.b16 %v671
        %v1022 = vunpack.c.l.b16 %v672
        %v1023 = vunpack.c.h.b16 %v672
        %v1024 = vunpack.c.l.b16 %v673
        %v1025 = vunpack.c.h.b16 %v673
        %v1026 = vunpack.c.l.b16 %v674
        %v1027 = vunpack.c.h.b16 %v674
        %v1028 = vunpack.c.l.b16 %v675
        %v1029 = vunpack.c.h.b16 %v675
        %v1030 = vunpack.c.l.b16 %v676
        %v1031 = vunpack.c.h.b16 %v676
        %v1032 = vunpack.c.l.b16 %v677
        %v1033 = vunpack.c.h.b16 %v677
        %v1034 = vunpack.c.l.b16 %v678
        %v1035 = vunpack.c.h.b16 %v678
        %v1036 = vunpack.c.l.b16 %v679
        %v1037 = vunpack.c.h.b16 %v679
        %v1038 = vunpack.c.l.b16 %v680
        %v1039 = vunpack.c.h.b16 %v680
        %v1040 = vunpack.c.l.b16 %v681
        %v1041 = vunpack.c.h.b16 %v681
        %v1042 = vunpack.c.l.b16 %v682
        %v1043 = vunpack.c.h.b16 %v682
        %v1044 = vunpack.c.l.b16 %v683
        %v1045 = vunpack.c.h.b16 %v683
        %v1046 = vunpack.c.l.b16 %v684
        %v1047 = vunpack.c.h.b16 %v684
        %v1048 = vunpack.c.l.b16 %v685
        %v1049 = vunpack.c.h.b16 %v685
        %v1050 = vunpack.c.l.b16 %v686
        %v1051 = vunpack.c.h.b16 %v686
        %v1052 = vunpack.c.l.b16 %v687
        %v1053 = vunpack.c.h.b16 %v687
        %v1054 = vunpack.c.l.b16 %v688
        %v1055 = vunpack.c.h.b16 %v688
        %v1056 = vunpack.c.l.b16 %v689
        %v1057 = vunpack.c.h.b16 %v689
        %v1058 = vunpack.c.l.b16 %v690
        %v1059 = vunpack.c.h.b16 %v690
        %v1060 = vunpack.c.l.b16 %v691
        %v1061 = vunpack.c.h.b16 %v691
        %v1062 = vunpack.c.l.b16 %v692
        %v1063 = vunpack.c.h.b16 %v692
        %v1064 = vunpack.c.l.b16 %v693
        %v1065 = vunpack.c.h.b16 %v693
        %v1066 = vunpack.c.l.b16 %v694
        %v1067 = vunpack.c.h.b16 %v694
        %v1068 = vunpack.c.l.b16 %v695
        %v1069 = vunpack.c.h.b16 %v695
        %v1070 = vunpack.c.l.b16 %v696
        %v1071 = vunpack.c.h.b16 %v696
        %v1072 = vunpack.c.l.b16 %v697
        %v1073 = vunpack.c.h.b16 %v697
        %v1074 = vunpack.c.l.b16 %v698
        %v1075 = vunpack.c.h.b16 %v698
        %v1076 = vunpack.c.l.b16 %v699
        %v1077 = vunpack.c.h.b16 %v699
        %v1078 = vunpack.c.l.b16 %v700
        %v1079 = vunpack.c.h.b16 %v700
        %v1080 = vunpack.c.l.b16 %v701
        %v1081 = vunpack.c.h.b16 %v701
        %v1082 = vunpack.c.l.b16 %v702
        %v1083 = vunpack.c.h.b16 %v702
        %v1084 = vunpack.c.l.b16 %v703
        %v1085 = vunpack.c.h.b16 %v703
        %v1086 = vunpack.c.l.b16 %v704
        %v1087 = vunpack.c.h.b16 %v704
        %v1088 = vunpack.c.l.b16 %v705
        %v1089 = vunpack.c.h.b16 %v705
        %v1090 = vunpack.c.l.b16 %v706
        %v1091 = vunpack.c.h.b16 %v706
        %v1092 = vunpack.c.l.b16 %v707
        %v1093 = vunpack.c.h.b16 %v707
        %v1094 = vunpack.c.l.b16 %v708
        %v1095 = vunpack.c.h.b16 %v708
        %v1096 = vunpack.c.l.b16 %v709
        %v1097 = vunpack.c.h.b16 %v709
        %v1098 = vunpack.c.l.b16 %v710
        %v1099 = vunpack.c.h.b16 %v710
        %v1100 = vunpack.c.l.b16 %v711
        %v1101 = vunpack.c.h.b16 %v711
        %v1102 = vpack.c.b16 %v848, %v846
        %v1103 = vpack.c.b16 %v849, %v847
        %v1104 = vpack.c.b16 %v852, %v850
        %v1105 = vpack.c.b16 %v853, %v851
        %v1106 = vpack.c.b16 %v856, %v854
        %v1107 = vpack.c.b16 %v857, %v855
        %v1108 = vpack.c.b16 %v860, %v858
        %v1109 = vpack.c.b16 %v861, %v859
        %v1110 = vpack.c.b16 %v864, %v862
        %v1111 = vpack.c.b16 %v865, %v863
        %v1112 = vpack.c.b16 %v868, %v866
        %v1113 = vpack.c.b16 %v869, %v867
        %v1114 = vpack.c.b16 %v872, %v870
        %v1115 = vpack.c.b16 %v873, %v871
        %v1116 = vpack.c.b16 %v876, %v874
        %v1117 = vpack.c.b16 %v877, %v875
        %v1118 = vpack.c.b16 %v880, %v878
        %v1119 = vpack.c.b16 %v881, %v879
        %v1120 = vpack.c.b16 %v884, %v882
        %v1121 = vpack.c.b16 %v885, %v883
        %v1122 = vpack.c.b16 %v888, %v886
        %v1123 = vpack.c.b16 %v889, %v887
        %v1124 = vpack.c.b16 %v892, %v890
        %v1125 = vpack.c.b16 %v893, %v891
        %v1126 = vpack.c.b16 %v896, %v894
        %v1127 = vpack.c.b16 %v897, %v895
        %v1128 = vpack.c.b16 %v900, %v898
        %v1129 = vpack.c.b16 %v901, %v899
        %v1130 = vpack.c.b16 %v904, %v902
        %v1131 = vpack.c.b16 %v905, %v903
        %v1132 = vpack.c.b16 %v908, %v906
        %v1133 = vpack.c.b16 %v909, %v907
        %v1134 = vpack.c.b16 %v912, %v910
        %v1135 = vpack.c.b16 %v913, %v911
        %v1136 = vpack.c.b16 %v916, %v914
        %v1137 = vpack.c.b16 %v917, %v915
        %v1138 = vpack.c.b16 %v920, %v918
        %v1139 = vpack.c.b16 %v921, %v919
        %v1140 = vpack.c.b16 %v924, %v922
        %v1141 = vpack.c.b16 %v925, %v923
        %v1142 = vpack.c.b16 %v928, %v926
        %v1143 = vpack.c.b16 %v929, %v927
        %v1144 = vpack.c.b16 %v932, %v930
        %v1145 = vpack.c.b16 %v933, %v931
        %v1146 = vpack.c.b16 %v936, %v934
        %v1147 = vpack.c.b16 %v937, %v935
        %v1148 = vpack.c.b16 %v940, %v938
        %v1149 = vpack.c.b16 %v941, %v939
        %v1150 = vpack.c.b16 %v944, %v942
        %v1151 = vpack.c.b16 %v945, %v943
        %v1152 = vpack.c.b16 %v948, %v946
        %v1153 = vpack.c.b16 %v949, %v947
        %v1154 = vpack.c.b16 %v952, %v950
        %v1155 = vpack.c.b16 %v953, %v951
        %v1156 = vpack.c.b16 %v956, %v954
        %v1157 = vpack.c.b16 %v957, %v955
        %v1158 = vpack.c.b16 %v960, %v958
        %v1159 = vpack.c.b16 %v961, %v959
        %v1160 = vpack.c.b16 %v964, %v962
        %v1161 = vpack.c.b16 %v965, %v963
        %v1162 = vpack.c.b16 %v968, %v966
        %v1163 = vpack.c.b16 %v969, %v967
        %v1164 = vpack.c.b16 %v972, %v970
        %v1165 = vpack.c.b16 %v973, %v971
        %v1166 = vpack.c.b16 %v976, %v974
        %v1167 = vpack.c.b16 %v977, %v975
        %v1168 = vpack.c.b16 %v980, %v978
        %v1169 = vpack.c.b16 %v981, %v979
        %v1170 = vpack.c.b16 %v984, %v982
        %v1171 = vpack.c.b16 %v985, %v983
        %v1172 = vpack.c.b16 %v988, %v986
        %v1173 = vpack.c.b16 %v989, %v987
        %v1174 = vpack.c.b16 %v992, %v990
        %v1175 = vpack.c.b16 %v993, %v991
        %v1176 = vpack.c.b16 %v996, %v994
        %v1177 = vpack.c.b16 %v997, %v995
        %v1178 = vpack.c.b16 %v1000, %v998
        %v1179 = vpack.c.b16 %v1001, %v999
        %v1180 = vpack.c.b16 %v1004, %v1002
        %v1181 = vpack.c.b16 %v1005, %v1003
        %v1182 = vpack.c.b16 %v1008, %v1006
        %v1183 = vpack.c.b16 %v1009, %v1007
        %v1184 = vpack.c.b16 %v1012, %v1010
        %v1185 = vpack.c.b16 %v1013, %v1011
        %v1186 = vpack.c.b16 %v1016, %v1014
        %v1187 = vpack.c.b16 %v1017, %v1015
        %v1188 = vpack.c.b16 %v1020, %v1018
        %v1189 = vpack.c.b16 %v1021, %v1019
        %v1190 = vpack.c.b16 %v1024, %v1022
        %v1191 = vpack.c.b16 %v1025, %v1023
        %v1192 = vpack.c.b16 %v1028, %v1026
        %v1193 = vpack.c.b16 %v1029, %v1027
        %v1194 = vpack.c.b16 %v1032, %v1030
        %v1195 = vpack.c.b16 %v1033, %v1031
        %v1196 = vpack.c.b16 %v1036, %v1034
        %v1197 = vpack.c.b16 %v1037, %v1035
        %v1198 = vpack.c.b16 %v1040, %v1038
        %v1199 = vpack.c.b16 %v1041, %v1039
        %v1200 = vpack.c.b16 %v1044, %v1042
        %v1201 = vpack.c.b16 %v1045, %v1043
        %v1202 = vpack.c.b16 %v1048, %v1046
        %v1203 = vpack.c.b16 %v1049, %v1047
        %v1204 = vpack.c.b16 %v1052, %v1050
        %v1205 = vpack.c.b16 %v1053, %v1051
        %v1206 = vpack.c.b16 %v1056, %v1054
        %v1207 = vpack.c.b16 %v1057, %v1055
        %v1208 = vpack.c.b16 %v1060, %v1058
        %v1209 = vpack.c.b16 %v1061, %v1059
        %v1210 = vpack.c.b16 %v1064, %v1062
        %v1211 = vpack.c.b16 %v1065, %v1063
        %v1212 = vpack.c.b16 %v1068, %v1066
        %v1213 = vpack.c.b16 %v1069, %v1067
        %v1214 = vpack.c.b16 %v1072, %v1070
        %v1215 = vpack.c.b16 %v1073, %v1071
        %v1216 = vpack.c.b16 %v1076, %v1074
        %v1217 = vpack.c.b16 %v1077, %v1075
        %v1218 = vpack.c.b16 %v1080, %v1078
        %v1219 = vpack.c.b16 %v1081, %v1079
        %v1220 = vpack.c.b16 %v1084, %v1082
        %v1221 = vpack.c.b16 %v1085, %v1083
        %v1222 = vpack.c.b16 %v1088, %v1086
        %v1223 = vpack.c.b16 %v1089, %v1087
        %v1224 = vpack.c.b16 %v1092, %v1090
        %v1225 = vpack.c.b16 %v1093, %v1091
        %v1226 = vpack.c.b16 %v1096, %v1094
        %v1227 = vpack.c.b16 %v1097, %v1095
        %v1228 = vpack.c.b16 %v1100, %v1098
        %v1229 = vpack.c.b16 %v1101, %v1099
        %1358 = vmatpush.bf16.msra.mxu0 %v1116
        %1359 = vmatpush.bf16.msra.mxu0 %v1114
        %1360 = vmatpush.bf16.msra.mxu0 %v1112
        %1361 = vmatpush.bf16.msra.mxu0 %v1110
        %1362 = vmatpush.bf16.msra.mxu0 %v1108
        %1363 = vmatpush.bf16.msra.mxu0 %v1106
        %1364 = vmatpush.bf16.msra.mxu0 %v1104
        %1365 = vmatpush.bf16.msra.mxu0 %v1102
        %1366 = vmatmul.bf16.gmra.mxu0 %v568
        %v1367 = vpop.f32.mrf.mxu0
        %v1368 = vadd.f32 %v714, %v1367
        %v1369 = vpop.f32.mrf.mxu0
        %v1370 = vadd.f32 %v714, %v1369
        %1371 = vmatmul.bf16.gmra.mxu0 %v576
        %v1372 = vpop.f32.mrf.mxu0
        %v1373 = vadd.f32 %v714, %v1372
        %v1374 = vpop.f32.mrf.mxu0
        %v1375 = vadd.f32 %v714, %v1374
        %1376 = vdwg.mxu0
        %1377 = vmatpush.bf16.msra.mxu0 %v1132
        %1378 = vmatpush.bf16.msra.mxu0 %v1130
        %1379 = vmatpush.bf16.msra.mxu0 %v1128
        %1380 = vmatpush.bf16.msra.mxu0 %v1126
        %1381 = vmatpush.bf16.msra.mxu0 %v1124
        %1382 = vmatpush.bf16.msra.mxu0 %v1122
        %1383 = vmatpush.bf16.msra.mxu0 %v1120
        %1384 = vmatpush.bf16.msra.mxu0 %v1118
        %1385 = vmatmul.bf16.gmra.mxu0 %v569
        %v1386 = vpop.f32.mrf.mxu0
        %v1387 = vadd.f32 %v1368, %v1386
        %v1388 = vpop.f32.mrf.mxu0
        %v1389 = vadd.f32 %v1370, %v1388
        %1390 = vmatmul.bf16.gmra.mxu0 %v577
        %v1391 = vpop.f32.mrf.mxu0
        %v1392 = vadd.f32 %v1373, %v1391
        %v1393 = vpop.f32.mrf.mxu0
        %v1394 = vadd.f32 %v1375, %v1393
        %1395 = vdwg.mxu0
        %1396 = vmatpush.bf16.msra.mxu0 %v1148
        %1397 = vmatpush.bf16.msra.mxu0 %v1146
        %1398 = vmatpush.bf16.msra.mxu0 %v1144
        %1399 = vmatpush.bf16.msra.mxu0 %v1142
        %1400 = vmatpush.bf16.msra.mxu0 %v1140
        %1401 = vmatpush.bf16.msra.mxu0 %v1138
        %1402 = vmatpush.bf16.msra.mxu0 %v1136
        %1403 = vmatpush.bf16.msra.mxu0 %v1134
        %1404 = vmatmul.bf16.gmra.mxu0 %v570
        %v1405 = vpop.f32.mrf.mxu0
        %v1406 = vadd.f32 %v1387, %v1405
        %v1407 = vpop.f32.mrf.mxu0
        %v1408 = vadd.f32 %v1389, %v1407
        %1409 = vmatmul.bf16.gmra.mxu0 %v578
        %v1410 = vpop.f32.mrf.mxu0
        %v1411 = vadd.f32 %v1392, %v1410
        %v1412 = vpop.f32.mrf.mxu0
        %v1413 = vadd.f32 %v1394, %v1412
        %1414 = vdwg.mxu0
        %1415 = vmatpush.bf16.msra.mxu0 %v1164
        %1416 = vmatpush.bf16.msra.mxu0 %v1162
        %1417 = vmatpush.bf16.msra.mxu0 %v1160
        %1418 = vmatpush.bf16.msra.mxu0 %v1158
        %1419 = vmatpush.bf16.msra.mxu0 %v1156
        %1420 = vmatpush.bf16.msra.mxu0 %v1154
        %1421 = vmatpush.bf16.msra.mxu0 %v1152
        %1422 = vmatpush.bf16.msra.mxu0 %v1150
        %1423 = vmatmul.bf16.gmra.mxu0 %v571
        %v1424 = vpop.f32.mrf.mxu0
        %v1425 = vadd.f32 %v1406, %v1424
        %v1426 = vpop.f32.mrf.mxu0
        %v1427 = vadd.f32 %v1408, %v1426
        %1428 = vmatmul.bf16.gmra.mxu0 %v579
        %v1429 = vpop.f32.mrf.mxu0
        %v1430 = vadd.f32 %v1411, %v1429
        %v1431 = vpop.f32.mrf.mxu0
        %v1432 = vadd.f32 %v1413, %v1431
        %1433 = vdwg.mxu0
        %1434 = vmatpush.bf16.msra.mxu0 %v1180
        %1435 = vmatpush.bf16.msra.mxu0 %v1178
        %1436 = vmatpush.bf16.msra.mxu0 %v1176
        %1437 = vmatpush.bf16.msra.mxu0 %v1174
        %1438 = vmatpush.bf16.msra.mxu0 %v1172
        %1439 = vmatpush.bf16.msra.mxu0 %v1170
        %1440 = vmatpush.bf16.msra.mxu0 %v1168
        %1441 = vmatpush.bf16.msra.mxu0 %v1166
        %1442 = vmatmul.bf16.gmra.mxu0 %v572
        %v1443 = vpop.f32.mrf.mxu0
        %v1444 = vadd.f32 %v1425, %v1443
        %v1445 = vpop.f32.mrf.mxu0
        %v1446 = vadd.f32 %v1427, %v1445
        %1447 = vmatmul.bf16.gmra.mxu0 %v580
        %v1448 = vpop.f32.mrf.mxu0
        %v1449 = vadd.f32 %v1430, %v1448
        %v1450 = vpop.f32.mrf.mxu0
        %v1451 = vadd.f32 %v1432, %v1450
        %1452 = vdwg.mxu0
        %1453 = vmatpush.bf16.msra.mxu0 %v1196
        %1454 = vmatpush.bf16.msra.mxu0 %v1194
        %1455 = vmatpush.bf16.msra.mxu0 %v1192
        %1456 = vmatpush.bf16.msra.mxu0 %v1190
        %1457 = vmatpush.bf16.msra.mxu0 %v1188
        %1458 = vmatpush.bf16.msra.mxu0 %v1186
        %1459 = vmatpush.bf16.msra.mxu0 %v1184
        %1460 = vmatpush.bf16.msra.mxu0 %v1182
        %1461 = vmatmul.bf16.gmra.mxu0 %v573
        %v1462 = vpop.f32.mrf.mxu0
        %v1463 = vadd.f32 %v1444, %v1462
        %v1464 = vpop.f32.mrf.mxu0
        %v1465 = vadd.f32 %v1446, %v1464
        %1466 = vmatmul.bf16.gmra.mxu0 %v581
        %v1467 = vpop.f32.mrf.mxu0
        %v1468 = vadd.f32 %v1449, %v1467
        %v1469 = vpop.f32.mrf.mxu0
        %v1470 = vadd.f32 %v1451, %v1469
        %1471 = vdwg.mxu0
        %1472 = vmatpush.bf16.msra.mxu0 %v1212
        %1473 = vmatpush.bf16.msra.mxu0 %v1210
        %1474 = vmatpush.bf16.msra.mxu0 %v1208
        %1475 = vmatpush.bf16.msra.mxu0 %v1206
        %1476 = vmatpush.bf16.msra.mxu0 %v1204
        %1477 = vmatpush.bf16.msra.mxu0 %v1202
        %1478 = vmatpush.bf16.msra.mxu0 %v1200
        %1479 = vmatpush.bf16.msra.mxu0 %v1198
        %1480 = vmatmul.bf16.gmra.mxu0 %v574
        %v1481 = vpop.f32.mrf.mxu0
        %v1482 = vadd.f32 %v1463, %v1481
        %v1483 = vpop.f32.mrf.mxu0
        %v1484 = vadd.f32 %v1465, %v1483
        %1485 = vmatmul.bf16.gmra.mxu0 %v582
        %v1486 = vpop.f32.mrf.mxu0
        %v1487 = vadd.f32 %v1468, %v1486
        %v1488 = vpop.f32.mrf.mxu0
        %v1489 = vadd.f32 %v1470, %v1488
        %1490 = vdwg.mxu0
        %1491 = vmatpush.bf16.msra.mxu0 %v1228
        %1492 = vmatpush.bf16.msra.mxu0 %v1226
        %1493 = vmatpush.bf16.msra.mxu0 %v1224
        %1494 = vmatpush.bf16.msra.mxu0 %v1222
        %1495 = vmatpush.bf16.msra.mxu0 %v1220
        %1496 = vmatpush.bf16.msra.mxu0 %v1218
        %1497 = vmatpush.bf16.msra.mxu0 %v1216
        %1498 = vmatpush.bf16.msra.mxu0 %v1214
        %1499 = vmatmul.bf16.gmra.mxu0 %v575
        %v1500 = vpop.f32.mrf.mxu0
        %v1501 = vadd.f32 %v1482, %v1500
        %v1502 = vpop.f32.mrf.mxu0
        %v1503 = vadd.f32 %v1484, %v1502
        %1504 = vmatmul.bf16.gmra.mxu0 %v583
        %v1505 = vpop.f32.mrf.mxu0
        %v1506 = vadd.f32 %v1487, %v1505
        %v1507 = vpop.f32.mrf.mxu0
        %v1508 = vadd.f32 %v1489, %v1507
        %1509 = vdwg.mxu0
        %1510 = vmatpush.bf16.msra.mxu0 %v1117
        %1511 = vmatpush.bf16.msra.mxu0 %v1115
        %1512 = vmatpush.bf16.msra.mxu0 %v1113
        %1513 = vmatpush.bf16.msra.mxu0 %v1111
        %1514 = vmatpush.bf16.msra.mxu0 %v1109
        %1515 = vmatpush.bf16.msra.mxu0 %v1107
        %1516 = vmatpush.bf16.msra.mxu0 %v1105
        %1517 = vmatpush.bf16.msra.mxu0 %v1103
        %1518 = vmatmul.bf16.gmra.mxu0 %v568
        %v1519 = vpop.f32.mrf.mxu0
        %v1520 = vadd.f32 %v715, %v1519
        %v1521 = vpop.f32.mrf.mxu0
        %v1522 = vadd.f32 %v715, %v1521
        %1523 = vmatmul.bf16.gmra.mxu0 %v576
        %v1524 = vpop.f32.mrf.mxu0
        %v1525 = vadd.f32 %v715, %v1524
        %v1526 = vpop.f32.mrf.mxu0
        %v1527 = vadd.f32 %v715, %v1526
        %1528 = vdwg.mxu0
        %1529 = vmatpush.bf16.msra.mxu0 %v1133
        %1530 = vmatpush.bf16.msra.mxu0 %v1131
        %1531 = vmatpush.bf16.msra.mxu0 %v1129
        %1532 = vmatpush.bf16.msra.mxu0 %v1127
        %1533 = vmatpush.bf16.msra.mxu0 %v1125
        %1534 = vmatpush.bf16.msra.mxu0 %v1123
        %1535 = vmatpush.bf16.msra.mxu0 %v1121
        %1536 = vmatpush.bf16.msra.mxu0 %v1119
        %1537 = vmatmul.bf16.gmra.mxu0 %v569
        %v1538 = vpop.f32.mrf.mxu0
        %v1539 = vadd.f32 %v1520, %v1538
        %v1540 = vpop.f32.mrf.mxu0
        %v1541 = vadd.f32 %v1522, %v1540
        %1542 = vmatmul.bf16.gmra.mxu0 %v577
        %v1543 = vpop.f32.mrf.mxu0
        %v1544 = vadd.f32 %v1525, %v1543
        %v1545 = vpop.f32.mrf.mxu0
        %v1546 = vadd.f32 %v1527, %v1545
        %1547 = vdwg.mxu0
        %1548 = vmatpush.bf16.msra.mxu0 %v1149
        %1549 = vmatpush.bf16.msra.mxu0 %v1147
        %1550 = vmatpush.bf16.msra.mxu0 %v1145
        %1551 = vmatpush.bf16.msra.mxu0 %v1143
        %1552 = vmatpush.bf16.msra.mxu0 %v1141
        %1553 = vmatpush.bf16.msra.mxu0 %v1139
        %1554 = vmatpush.bf16.msra.mxu0 %v1137
        %1555 = vmatpush.bf16.msra.mxu0 %v1135
        %1556 = vmatmul.bf16.gmra.mxu0 %v570
        %v1557 = vpop.f32.mrf.mxu0
        %v1558 = vadd.f32 %v1539, %v1557
        %v1559 = vpop.f32.mrf.mxu0
        %v1560 = vadd.f32 %v1541, %v1559
        %1561 = vmatmul.bf16.gmra.mxu0 %v578
        %v1562 = vpop.f32.mrf.mxu0
        %v1563 = vadd.f32 %v1544, %v1562
        %v1564 = vpop.f32.mrf.mxu0
        %v1565 = vadd.f32 %v1546, %v1564
        %1566 = vdwg.mxu0
        %1567 = vmatpush.bf16.msra.mxu0 %v1165
        %1568 = vmatpush.bf16.msra.mxu0 %v1163
        %1569 = vmatpush.bf16.msra.mxu0 %v1161
        %1570 = vmatpush.bf16.msra.mxu0 %v1159
        %1571 = vmatpush.bf16.msra.mxu0 %v1157
        %1572 = vmatpush.bf16.msra.mxu0 %v1155
        %1573 = vmatpush.bf16.msra.mxu0 %v1153
        %1574 = vmatpush.bf16.msra.mxu0 %v1151
        %1575 = vmatmul.bf16.gmra.mxu0 %v571
        %v1576 = vpop.f32.mrf.mxu0
        %v1577 = vadd.f32 %v1558, %v1576
        %v1578 = vpop.f32.mrf.mxu0
        %v1579 = vadd.f32 %v1560, %v1578
        %1580 = vmatmul.bf16.gmra.mxu0 %v579
        %v1581 = vpop.f32.mrf.mxu0
        %v1582 = vadd.f32 %v1563, %v1581
        %v1583 = vpop.f32.mrf.mxu0
        %v1584 = vadd.f32 %v1565, %v1583
        %1585 = vdwg.mxu0
        %1586 = vmatpush.bf16.msra.mxu0 %v1181
        %1587 = vmatpush.bf16.msra.mxu0 %v1179
        %1588 = vmatpush.bf16.msra.mxu0 %v1177
        %1589 = vmatpush.bf16.msra.mxu0 %v1175
        %1590 = vmatpush.bf16.msra.mxu0 %v1173
        %1591 = vmatpush.bf16.msra.mxu0 %v1171
        %1592 = vmatpush.bf16.msra.mxu0 %v1169
        %1593 = vmatpush.bf16.msra.mxu0 %v1167
        %1594 = vmatmul.bf16.gmra.mxu0 %v572
        %v1595 = vpop.f32.mrf.mxu0
        %v1596 = vadd.f32 %v1577, %v1595
        %v1597 = vpop.f32.mrf.mxu0
        %v1598 = vadd.f32 %v1579, %v1597
        %1599 = vmatmul.bf16.gmra.mxu0 %v580
        %v1600 = vpop.f32.mrf.mxu0
        %v1601 = vadd.f32 %v1582, %v1600
        %v1602 = vpop.f32.mrf.mxu0
        %v1603 = vadd.f32 %v1584, %v1602
        %1604 = vdwg.mxu0
        %1605 = vmatpush.bf16.msra.mxu0 %v1197
        %1606 = vmatpush.bf16.msra.mxu0 %v1195
        %1607 = vmatpush.bf16.msra.mxu0 %v1193
        %1608 = vmatpush.bf16.msra.mxu0 %v1191
        %1609 = vmatpush.bf16.msra.mxu0 %v1189
        %1610 = vmatpush.bf16.msra.mxu0 %v1187
        %1611 = vmatpush.bf16.msra.mxu0 %v1185
        %1612 = vmatpush.bf16.msra.mxu0 %v1183
        %1613 = vmatmul.bf16.gmra.mxu0 %v573
        %v1614 = vpop.f32.mrf.mxu0
        %v1615 = vadd.f32 %v1596, %v1614
        %v1616 = vpop.f32.mrf.mxu0
        %v1617 = vadd.f32 %v1598, %v1616
        %1618 = vmatmul.bf16.gmra.mxu0 %v581
        %v1619 = vpop.f32.mrf.mxu0
        %v1620 = vadd.f32 %v1601, %v1619
        %v1621 = vpop.f32.mrf.mxu0
        %v1622 = vadd.f32 %v1603, %v1621
        %1623 = vdwg.mxu0
        %1624 = vmatpush.bf16.msra.mxu0 %v1213
        %1625 = vmatpush.bf16.msra.mxu0 %v1211
        %1626 = vmatpush.bf16.msra.mxu0 %v1209
        %1627 = vmatpush.bf16.msra.mxu0 %v1207
        %1628 = vmatpush.bf16.msra.mxu0 %v1205
        %1629 = vmatpush.bf16.msra.mxu0 %v1203
        %1630 = vmatpush.bf16.msra.mxu0 %v1201
        %1631 = vmatpush.bf16.msra.mxu0 %v1199
        %1632 = vmatmul.bf16.gmra.mxu0 %v574
        %v1633 = vpop.f32.mrf.mxu0
        %v1634 = vadd.f32 %v1615, %v1633
        %v1635 = vpop.f32.mrf.mxu0
        %v1636 = vadd.f32 %v1617, %v1635
        %1637 = vmatmul.bf16.gmra.mxu0 %v582
        %v1638 = vpop.f32.mrf.mxu0
        %v1639 = vadd.f32 %v1620, %v1638
        %v1640 = vpop.f32.mrf.mxu0
        %v1641 = vadd.f32 %v1622, %v1640
        %1642 = vdwg.mxu0
        %1643 = vmatpush.bf16.msra.mxu0 %v1229
        %1644 = vmatpush.bf16.msra.mxu0 %v1227
        %1645 = vmatpush.bf16.msra.mxu0 %v1225
        %1646 = vmatpush.bf16.msra.mxu0 %v1223
        %1647 = vmatpush.bf16.msra.mxu0 %v1221
        %1648 = vmatpush.bf16.msra.mxu0 %v1219
        %1649 = vmatpush.bf16.msra.mxu0 %v1217
        %1650 = vmatpush.bf16.msra.mxu0 %v1215
        %1651 = vmatmul.bf16.gmra.mxu0 %v575
        %v1652 = vpop.f32.mrf.mxu0
        %v1653 = vadd.f32 %v1634, %v1652
        %v1654 = vpop.f32.mrf.mxu0
        %v1655 = vadd.f32 %v1636, %v1654
        %1656 = vmatmul.bf16.gmra.mxu0 %v583
        %v1657 = vpop.f32.mrf.mxu0
        %v1658 = vadd.f32 %v1639, %v1657
        %v1659 = vpop.f32.mrf.mxu0
        %v1660 = vadd.f32 %v1641, %v1659
        %1661 = vdwg.mxu0
        %v1662 = vmax.f32 %v1501, 0.0
        %v1663 = vmax.f32 %v1653, 0.0
        %v1664 = vmax.f32 %v1503, 0.0
        %v1665 = vmax.f32 %v1655, 0.0
        %v1666 = vmax.f32 %v1506, 0.0
        %v1667 = vmax.f32 %v1658, 0.0
        %v1668 = vmax.f32 %v1508, 0.0
        %v1669 = vmax.f32 %v1660, 0.0
        %v1670 = vpack.c.bf16 %v1664, %v1662
        %v1671 = vpack.c.bf16 %v1665, %v1663
        %v1672 = vpack.c.bf16 %v1668, %v1666
        %v1673 = vpack.c.bf16 %v1669, %v1667
        %v1674 = vld [vmem:[#allocation8] sm:$0xf]
        %v1675 = vld [vmem:[#allocation8 + $0x4] sm:$0xf]
        %v1676 = vld [vmem:[#allocation8 + $0x8] sm:$0xf]
        %v1677 = vld [vmem:[#allocation8 + $0xc] sm:$0xf]
        %v1678 = vld [vmem:[#allocation8 + $0x10] sm:$0xf]
        %v1679 = vld [vmem:[#allocation8 + $0x14] sm:$0xf]
        %v1680 = vld [vmem:[#allocation8 + $0x18] sm:$0xf]
        %v1681 = vld [vmem:[#allocation8 + $0x1c] sm:$0xf]
        %v1682 = vld [vmem:[#allocation8 + $0x20] sm:$0xf]
        %v1683 = vld [vmem:[#allocation8 + $0x24] sm:$0xf]
        %v1684 = vld [vmem:[#allocation8 + $0x28] sm:$0xf]
        %v1685 = vld [vmem:[#allocation8 + $0x2c] sm:$0xf]
        %v1686 = vld [vmem:[#allocation8 + $0x30] sm:$0xf]
        %v1687 = vld [vmem:[#allocation8 + $0x34] sm:$0xf]
        %v1688 = vld [vmem:[#allocation8 + $0x38] sm:$0xf]
        %v1689 = vld [vmem:[#allocation8 + $0x3c] sm:$0xf]
        %v1690 = vld [vmem:[#allocation8 + $0x40] sm:$0xf]
        %v1691 = vld [vmem:[#allocation8 + $0x44] sm:$0xf]
        %v1692 = vld [vmem:[#allocation8 + $0x48] sm:$0xf]
        %v1693 = vld [vmem:[#allocation8 + $0x4c] sm:$0xf]
        %v1694 = vld [vmem:[#allocation8 + $0x50] sm:$0xf]
        %v1695 = vld [vmem:[#allocation8 + $0x54] sm:$0xf]
        %v1696 = vld [vmem:[#allocation8 + $0x58] sm:$0xf]
        %v1697 = vld [vmem:[#allocation8 + $0x5c] sm:$0xf]
        %v1698 = vld [vmem:[#allocation8 + $0x60] sm:$0xf]
        %v1699 = vld [vmem:[#allocation8 + $0x64] sm:$0xf]
        %v1700 = vld [vmem:[#allocation8 + $0x68] sm:$0xf]
        %v1701 = vld [vmem:[#allocation8 + $0x6c] sm:$0xf]
        %v1702 = vld [vmem:[#allocation8 + $0x70] sm:$0xf]
        %v1703 = vld [vmem:[#allocation8 + $0x74] sm:$0xf]
        %v1704 = vld [vmem:[#allocation8 + $0x78] sm:$0xf]
        %v1705 = vld [vmem:[#allocation8 + $0x7c] sm:$0xf]
        %v1706 = vld [vmem:[#allocation10] sm:$0x1]
        %v1708 = vperm.slane %v1706, 0
        %v1742 = vunpack.c.l.b16 %v1674
        %v1743 = vunpack.c.l.b16 %v1675
        %v1744 = vunpack.c.l.b16 %v1676
        %v1745 = vunpack.c.l.b16 %v1677
        %v1746 = vunpack.c.l.b16 %v1678
        %v1747 = vunpack.c.l.b16 %v1679
        %v1748 = vunpack.c.l.b16 %v1680
        %v1749 = vunpack.c.l.b16 %v1681
        %v1750 = vunpack.c.l.b16 %v1682
        %v1751 = vunpack.c.l.b16 %v1683
        %v1752 = vunpack.c.l.b16 %v1684
        %v1753 = vunpack.c.l.b16 %v1685
        %v1754 = vunpack.c.l.b16 %v1686
        %v1755 = vunpack.c.l.b16 %v1687
        %v1756 = vunpack.c.l.b16 %v1688
        %v1757 = vunpack.c.l.b16 %v1689
        %v1758 = vunpack.c.l.b16 %v1690
        %v1759 = vunpack.c.l.b16 %v1691
        %v1760 = vunpack.c.l.b16 %v1692
        %v1761 = vunpack.c.l.b16 %v1693
        %v1762 = vunpack.c.l.b16 %v1694
        %v1763 = vunpack.c.l.b16 %v1695
        %v1764 = vunpack.c.l.b16 %v1696
        %v1765 = vunpack.c.l.b16 %v1697
        %v1766 = vunpack.c.l.b16 %v1698
        %v1767 = vunpack.c.l.b16 %v1699
        %v1768 = vunpack.c.l.b16 %v1700
        %v1769 = vunpack.c.l.b16 %v1701
        %v1770 = vunpack.c.l.b16 %v1702
        %v1771 = vunpack.c.l.b16 %v1703
        %v1772 = vunpack.c.l.b16 %v1704
        %v1773 = vunpack.c.l.b16 %v1705
        %v1774 = vpack.c.b16 %v1743, %v1742
        %v1775 = vpack.c.b16 %v1745, %v1744
        %v1776 = vpack.c.b16 %v1747, %v1746
        %v1777 = vpack.c.b16 %v1749, %v1748
        %v1778 = vpack.c.b16 %v1751, %v1750
        %v1779 = vpack.c.b16 %v1753, %v1752
        %v1780 = vpack.c.b16 %v1755, %v1754
        %v1781 = vpack.c.b16 %v1757, %v1756
        %v1782 = vpack.c.b16 %v1759, %v1758
        %v1783 = vpack.c.b16 %v1761, %v1760
        %v1784 = vpack.c.b16 %v1763, %v1762
        %v1785 = vpack.c.b16 %v1765, %v1764
        %v1786 = vpack.c.b16 %v1767, %v1766
        %v1787 = vpack.c.b16 %v1769, %v1768
        %v1788 = vpack.c.b16 %v1771, %v1770
        %v1789 = vpack.c.b16 %v1773, %v1772
        %1806 = vmatpush.bf16.msra.mxu0 %v1781
        %1807 = vmatpush.bf16.msra.mxu0 %v1780
        %1808 = vmatpush.bf16.msra.mxu0 %v1779
        %1809 = vmatpush.bf16.msra.mxu0 %v1778
        %1810 = vmatpush.bf16.msra.mxu0 %v1777
        %1811 = vmatpush.bf16.msra.mxu0 %v1776
        %1812 = vmatpush.bf16.msra.mxu0 %v1775
        %1813 = vmatpush.bf16.msra.mxu0 %v1774
        %1814 = vmatmul.bf16.gmra.mxu0 %v1670
        %v1815 = vpop.f32.mrf.mxu0
        %v1816 = vadd.f32 %v1708, %v1815
        %v1817 = vpop.f32.mrf.mxu0
        %v1818 = vadd.f32 %v1708, %v1817
        %1819 = vmatmul.bf16.gmra.mxu0 %v1672
        %v1820 = vpop.f32.mrf.mxu0
        %v1821 = vadd.f32 %v1708, %v1820
        %v1822 = vpop.f32.mrf.mxu0
        %v1823 = vadd.f32 %v1708, %v1822
        %1824 = vdwg.mxu0
        %1825 = vmatpush.bf16.msra.mxu0 %v1789
        %1826 = vmatpush.bf16.msra.mxu0 %v1788
        %1827 = vmatpush.bf16.msra.mxu0 %v1787
        %1828 = vmatpush.bf16.msra.mxu0 %v1786
        %1829 = vmatpush.bf16.msra.mxu0 %v1785
        %1830 = vmatpush.bf16.msra.mxu0 %v1784
        %1831 = vmatpush.bf16.msra.mxu0 %v1783
        %1832 = vmatpush.bf16.msra.mxu0 %v1782
        %1833 = vmatmul.bf16.gmra.mxu0 %v1671
        %v1834 = vpop.f32.mrf.mxu0
        %v1835 = vadd.f32 %v1816, %v1834
        %v1836 = vpop.f32.mrf.mxu0
        %v1837 = vadd.f32 %v1818, %v1836
        %1838 = vmatmul.bf16.gmra.mxu0 %v1673
        %v1839 = vpop.f32.mrf.mxu0
        %v1840 = vadd.f32 %v1821, %v1839
        %v1841 = vpop.f32.mrf.mxu0
        %v1842 = vadd.f32 %v1823, %v1841
        %1843 = vdwg.mxu0
        %v1844 = vmax.f32 %v1835, 0.0
        %v1845 = vmax.f32 %v1837, 0.0
        %v1846 = vmax.f32 %v1840, 0.0
        %v1847 = vmax.f32 %v1842, 0.0
        %v1848 = vpack.c.bf16 %v1845, %v1844
        %v1849 = vpack.c.bf16 %v1847, %v1846
        %v1850 = vld [vmem:[#allocation11] sm:$0xf]
        %v1851 = vld [vmem:[#allocation11 + $0x4] sm:$0xf]
        %v1852 = vld [vmem:[#allocation11 + $0x8] sm:$0xf]
        %v1853 = vld [vmem:[#allocation11 + $0xc] sm:$0xf]
        %v1854 = vld [vmem:[#allocation11 + $0x10] sm:$0xf]
        %v1855 = vld [vmem:[#allocation11 + $0x14] sm:$0xf]
        %v1856 = vld [vmem:[#allocation11 + $0x18] sm:$0xf]
        %v1857 = vld [vmem:[#allocation11 + $0x1c] sm:$0xf]
        %v1858 = vld [vmem:[#allocation11 + $0x20] sm:$0xf]
        %v1859 = vld [vmem:[#allocation11 + $0x24] sm:$0xf]
        %v1860 = vld [vmem:[#allocation11 + $0x28] sm:$0xf]
        %v1861 = vld [vmem:[#allocation11 + $0x2c] sm:$0xf]
        %v1862 = vld [vmem:[#allocation11 + $0x30] sm:$0xf]
        %v1863 = vld [vmem:[#allocation11 + $0x34] sm:$0xf]
        %v1864 = vld [vmem:[#allocation11 + $0x38] sm:$0xf]
        %v1865 = vld [vmem:[#allocation11 + $0x3c] sm:$0xf]
        %v1866 = vld [vmem:[%s6] sm:$0x1]
        %v1868 = vperm.slane %v1866, 0
        %v1886 = vunpack.c.l.b16 %v1850
        %v1887 = vunpack.c.l.b16 %v1851
        %v1888 = vunpack.c.l.b16 %v1852
        %v1889 = vunpack.c.l.b16 %v1853
        %v1890 = vunpack.c.l.b16 %v1854
        %v1891 = vunpack.c.l.b16 %v1855
        %v1892 = vunpack.c.l.b16 %v1856
        %v1893 = vunpack.c.l.b16 %v1857
        %v1894 = vunpack.c.l.b16 %v1858
        %v1895 = vunpack.c.l.b16 %v1859
        %v1896 = vunpack.c.l.b16 %v1860
        %v1897 = vunpack.c.l.b16 %v1861
        %v1898 = vunpack.c.l.b16 %v1862
        %v1899 = vunpack.c.l.b16 %v1863
        %v1900 = vunpack.c.l.b16 %v1864
        %v1901 = vunpack.c.l.b16 %v1865
        %v1902 = vpack.c.b16 %v1887, %v1886
        %v1903 = vpack.c.b16 %v1889, %v1888
        %v1904 = vpack.c.b16 %v1891, %v1890
        %v1905 = vpack.c.b16 %v1893, %v1892
        %v1906 = vpack.c.b16 %v1895, %v1894
        %v1907 = vpack.c.b16 %v1897, %v1896
        %v1908 = vpack.c.b16 %v1899, %v1898
        %v1909 = vpack.c.b16 %v1901, %v1900
        %1918 = vmatpush.bf16.msra.mxu0 %v1909
        %1919 = vmatpush.bf16.msra.mxu0 %v1908
        %1920 = vmatpush.bf16.msra.mxu0 %v1907
        %1921 = vmatpush.bf16.msra.mxu0 %v1906
        %1922 = vmatpush.bf16.msra.mxu0 %v1905
        %1923 = vmatpush.bf16.msra.mxu0 %v1904
        %1924 = vmatpush.bf16.msra.mxu0 %v1903
        %1925 = vmatpush.bf16.msra.mxu0 %v1902
        %1926 = vmatmul.bf16.gmra.mxu0 %v1848
        %v1927 = vpop.f32.mrf.mxu0
        %v1928 = vadd.f32 %v1868, %v1927
        %v1929 = vpop.f32.mrf.mxu0
        %v1930 = vadd.f32 %v1868, %v1929
        %1931 = vmatmul.bf16.gmra.mxu0 %v1849
        %v1932 = vpop.f32.mrf.mxu0
        %v1933 = vadd.f32 %v1868, %v1932
        %v1934 = vpop.f32.mrf.mxu0
        %v1935 = vadd.f32 %v1868, %v1934
        %1936 = vdwg.mxu0
        %v1937 = vmax.f32 %v1928, 0.0
        %v1938 = vmax.f32 %v1930, 0.0
        %v1939 = vmax.f32 %v1933, 0.0
        %v1940 = vmax.f32 %v1935, 0.0
        %v1941 = vpack.c.bf16 %v1938, %v1937
        %v1942 = vpack.c.bf16 %v1940, %v1939
        %v1943 = vld [vmem:[#allocation13] sm:$0xff]
        %v1944 = vld [vmem:[#allocation13 + $0x8] sm:$0xff]
        %v1945 = vld [vmem:[#allocation13 + $0x10] sm:$0xff]
        %v1946 = vld [vmem:[#allocation13 + $0x18] sm:$0xff]
        %v1947 = vld [vmem:[#allocation13 + $0x20] sm:$0xff]
        %v1948 = vld [vmem:[#allocation13 + $0x28] sm:$0xff]
        %v1949 = vld [vmem:[#allocation13 + $0x30] sm:$0xff]
        %v1950 = vld [vmem:[#allocation13 + $0x38] sm:$0xff]
        %v1951 = vld [vmem:[#allocation13 + $0x40] sm:$0xff]
        %v1952 = vld [vmem:[#allocation13 + $0x48] sm:$0xff]
        %v1953 = vld [vmem:[#allocation13 + $0x50] sm:$0xff]
        %v1954 = vld [vmem:[#allocation13 + $0x58] sm:$0xff]
        %v1955 = vld [vmem:[#allocation13 + $0x60] sm:$0xff]
        %v1956 = vld [vmem:[#allocation13 + $0x68] sm:$0xff]
        %v1957 = vld [vmem:[#allocation13 + $0x70] sm:$0xff]
        %v1958 = vld [vmem:[#allocation13 + $0x78] sm:$0xff]
        %v1959 = vld [vmem:[%s8] sm:$0x3]
        %v1961 = vperm.slane %v1959, 0
        %v1962 = vperm.slane %v1959, 1
        %v1981 = vunpack.c.l.b16 %v1943
        %v1982 = vunpack.c.h.b16 %v1943
        %v1983 = vunpack.c.l.b16 %v1944
        %v1984 = vunpack.c.h.b16 %v1944
        %v1985 = vunpack.c.l.b16 %v1945
        %v1986 = vunpack.c.h.b16 %v1945
        %v1987 = vunpack.c.l.b16 %v1946
        %v1988 = vunpack.c.h.b16 %v1946
        %v1989 = vunpack.c.l.b16 %v1947
        %v1990 = vunpack.c.h.b16 %v1947
        %v1991 = vunpack.c.l.b16 %v1948
        %v1992 = vunpack.c.h.b16 %v1948
        %v1993 = vunpack.c.l.b16 %v1949
        %v1994 = vunpack.c.h.b16 %v1949
        %v1995 = vunpack.c.l.b16 %v1950
        %v1996 = vunpack.c.h.b16 %v1950
        %v1997 = vunpack.c.l.b16 %v1951
        %v1998 = vunpack.c.h.b16 %v1951
        %v1999 = vunpack.c.l.b16 %v1952
        %v2000 = vunpack.c.h.b16 %v1952
        %v2001 = vunpack.c.l.b16 %v1953
        %v2002 = vunpack.c.h.b16 %v1953
        %v2003 = vunpack.c.l.b16 %v1954
        %v2004 = vunpack.c.h.b16 %v1954
        %v2005 = vunpack.c.l.b16 %v1955
        %v2006 = vunpack.c.h.b16 %v1955
        %v2007 = vunpack.c.l.b16 %v1956
        %v2008 = vunpack.c.h.b16 %v1956
        %v2009 = vunpack.c.l.b16 %v1957
        %v2010 = vunpack.c.h.b16 %v1957
        %v2011 = vunpack.c.l.b16 %v1958
        %v2012 = vunpack.c.h.b16 %v1958
        %v2013 = vpack.c.b16 %v1983, %v1981
        %v2014 = vpack.c.b16 %v1984, %v1982
        %v2015 = vpack.c.b16 %v1987, %v1985
        %v2016 = vpack.c.b16 %v1988, %v1986
        %v2017 = vpack.c.b16 %v1991, %v1989
        %v2018 = vpack.c.b16 %v1992, %v1990
        %v2019 = vpack.c.b16 %v1995, %v1993
        %v2020 = vpack.c.b16 %v1996, %v1994
        %v2021 = vpack.c.b16 %v1999, %v1997
        %v2022 = vpack.c.b16 %v2000, %v1998
        %v2023 = vpack.c.b16 %v2003, %v2001
        %v2024 = vpack.c.b16 %v2004, %v2002
        %v2025 = vpack.c.b16 %v2007, %v2005
        %v2026 = vpack.c.b16 %v2008, %v2006
        %v2027 = vpack.c.b16 %v2011, %v2009
        %v2028 = vpack.c.b16 %v2012, %v2010
        %2045 = vmatpush.bf16.msra.mxu0 %v2027
        %2046 = vmatpush.bf16.msra.mxu0 %v2025
        %2047 = vmatpush.bf16.msra.mxu0 %v2023
        %2048 = vmatpush.bf16.msra.mxu0 %v2021
        %2049 = vmatpush.bf16.msra.mxu0 %v2019
        %2050 = vmatpush.bf16.msra.mxu0 %v2017
        %2051 = vmatpush.bf16.msra.mxu0 %v2015
        %2052 = vmatpush.bf16.msra.mxu0 %v2013
        %2053 = vmatmul.bf16.gmra.mxu0 %v1941
        %v2054 = vpop.f32.mrf.mxu0
        %v2055 = vadd.f32 %v1961, %v2054
        %v2056 = vpop.f32.mrf.mxu0
        %v2057 = vadd.f32 %v1961, %v2056
        %2058 = vmatmul.bf16.gmra.mxu0 %v1942
        %v2059 = vpop.f32.mrf.mxu0
        %v2060 = vadd.f32 %v1961, %v2059
        %v2061 = vpop.f32.mrf.mxu0
        %v2062 = vadd.f32 %v1961, %v2061
        %2063 = vdwg.mxu0
        %2064 = vmatpush.bf16.msra.mxu0 %v2028
        %2065 = vmatpush.bf16.msra.mxu0 %v2026
        %2066 = vmatpush.bf16.msra.mxu0 %v2024
        %2067 = vmatpush.bf16.msra.mxu0 %v2022
        %2068 = vmatpush.bf16.msra.mxu0 %v2020
        %2069 = vmatpush.bf16.msra.mxu0 %v2018
        %2070 = vmatpush.bf16.msra.mxu0 %v2016
        %2071 = vmatpush.bf16.msra.mxu0 %v2014
        %2072 = vmatmul.bf16.gmra.mxu0 %v1941
        %v2073 = vpop.f32.mrf.mxu0
        %v2074 = vadd.f32 %v1962, %v2073
        %v2075 = vpop.f32.mrf.mxu0
        %v2076 = vadd.f32 %v1962, %v2075
        %2077 = vmatmul.bf16.gmra.mxu0 %v1942
        %v2078 = vpop.f32.mrf.mxu0
        %v2079 = vadd.f32 %v1962, %v2078
        %v2080 = vpop.f32.mrf.mxu0
        %v2081 = vadd.f32 %v1962, %v2080
        %2082 = vdwg.mxu0
        %v2083 = vmax.f32 %v2055, 0.0
        %v2084 = vmax.f32 %v2074, 0.0
        %v2085 = vmax.f32 %v2057, 0.0
        %v2086 = vmax.f32 %v2076, 0.0
        %v2087 = vmax.f32 %v2060, 0.0
        %v2088 = vmax.f32 %v2079, 0.0
        %v2089 = vmax.f32 %v2062, 0.0
        %v2090 = vmax.f32 %v2081, 0.0
        %v2091 = vpack.c.bf16 %v2085, %v2083
        %v2092 = vpack.c.bf16 %v2086, %v2084
        %v2093 = vpack.c.bf16 %v2089, %v2087
        %v2094 = vpack.c.bf16 %v2090, %v2088
        %v2095 = vld [vmem:[#allocation14] sm:$0xff]
        %v2096 = vld [vmem:[#allocation14 + $0x8] sm:$0xff]
        %v2097 = vld [vmem:[#allocation14 + $0x10] sm:$0xff]
        %v2098 = vld [vmem:[#allocation14 + $0x18] sm:$0xff]
        %v2099 = vld [vmem:[#allocation14 + $0x20] sm:$0xff]
        %v2100 = vld [vmem:[#allocation14 + $0x28] sm:$0xff]
        %v2101 = vld [vmem:[#allocation14 + $0x30] sm:$0xff]
        %v2102 = vld [vmem:[#allocation14 + $0x38] sm:$0xff]
        %v2103 = vld [vmem:[#allocation14 + $0x40] sm:$0xff]
        %v2104 = vld [vmem:[#allocation14 + $0x48] sm:$0xff]
        %v2105 = vld [vmem:[#allocation14 + $0x50] sm:$0xff]
        %v2106 = vld [vmem:[#allocation14 + $0x58] sm:$0xff]
        %v2107 = vld [vmem:[#allocation14 + $0x60] sm:$0xff]
        %v2108 = vld [vmem:[#allocation14 + $0x68] sm:$0xff]
        %v2109 = vld [vmem:[#allocation14 + $0x70] sm:$0xff]
        %v2110 = vld [vmem:[#allocation14 + $0x78] sm:$0xff]
        %v2111 = vld [vmem:[#allocation14 + $0x80] sm:$0xff]
        %v2112 = vld [vmem:[#allocation14 + $0x88] sm:$0xff]
        %v2113 = vld [vmem:[#allocation14 + $0x90] sm:$0xff]
        %v2114 = vld [vmem:[#allocation14 + $0x98] sm:$0xff]
        %v2115 = vld [vmem:[#allocation14 + $0xa0] sm:$0xff]
        %v2116 = vld [vmem:[#allocation14 + $0xa8] sm:$0xff]
        %v2117 = vld [vmem:[#allocation14 + $0xb0] sm:$0xff]
        %v2118 = vld [vmem:[#allocation14 + $0xb8] sm:$0xff]
        %v2119 = vld [vmem:[#allocation14 + $0xc0] sm:$0xff]
        %v2120 = vld [vmem:[#allocation14 + $0xc8] sm:$0xff]
        %v2121 = vld [vmem:[#allocation14 + $0xd0] sm:$0xff]
        %v2122 = vld [vmem:[#allocation14 + $0xd8] sm:$0xff]
        %v2123 = vld [vmem:[#allocation14 + $0xe0] sm:$0xff]
        %v2124 = vld [vmem:[#allocation14 + $0xe8] sm:$0xff]
        %v2125 = vld [vmem:[#allocation14 + $0xf0] sm:$0xff]
        %v2126 = vld [vmem:[#allocation14 + $0xf8] sm:$0xff]
        %v2127 = vld [vmem:[#allocation14 + $0x100] sm:$0xff]
        %v2128 = vld [vmem:[#allocation14 + $0x108] sm:$0xff]
        %v2129 = vld [vmem:[#allocation14 + $0x110] sm:$0xff]
        %v2130 = vld [vmem:[#allocation14 + $0x118] sm:$0xff]
        %v2131 = vld [vmem:[#allocation14 + $0x120] sm:$0xff]
        %v2132 = vld [vmem:[#allocation14 + $0x128] sm:$0xff]
        %v2133 = vld [vmem:[#allocation14 + $0x130] sm:$0xff]
        %v2134 = vld [vmem:[#allocation14 + $0x138] sm:$0xff]
        %v2135 = vld [vmem:[#allocation14 + $0x140] sm:$0xff]
        %v2136 = vld [vmem:[#allocation14 + $0x148] sm:$0xff]
        %v2137 = vld [vmem:[#allocation14 + $0x150] sm:$0xff]
        %v2138 = vld [vmem:[#allocation14 + $0x158] sm:$0xff]
        %v2139 = vld [vmem:[#allocation14 + $0x160] sm:$0xff]
        %v2140 = vld [vmem:[#allocation14 + $0x168] sm:$0xff]
        %v2141 = vld [vmem:[#allocation14 + $0x170] sm:$0xff]
        %v2142 = vld [vmem:[#allocation14 + $0x178] sm:$0xff]
        %v2143 = vld [vmem:[#allocation14 + $0x180] sm:$0xff]
        %v2144 = vld [vmem:[#allocation14 + $0x188] sm:$0xff]
        %v2145 = vld [vmem:[#allocation14 + $0x190] sm:$0xff]
        %v2146 = vld [vmem:[#allocation14 + $0x198] sm:$0xff]
        %v2147 = vld [vmem:[#allocation14 + $0x1a0] sm:$0xff]
        %v2148 = vld [vmem:[#allocation14 + $0x1a8] sm:$0xff]
        %v2149 = vld [vmem:[#allocation14 + $0x1b0] sm:$0xff]
        %v2150 = vld [vmem:[#allocation14 + $0x1b8] sm:$0xff]
        %v2151 = vld [vmem:[#allocation14 + $0x1c0] sm:$0xff]
        %v2152 = vld [vmem:[#allocation14 + $0x1c8] sm:$0xff]
        %v2153 = vld [vmem:[#allocation14 + $0x1d0] sm:$0xff]
        %v2154 = vld [vmem:[#allocation14 + $0x1d8] sm:$0xff]
        %v2155 = vld [vmem:[#allocation14 + $0x1e0] sm:$0xff]
        %v2156 = vld [vmem:[#allocation14 + $0x1e8] sm:$0xff]
        %v2157 = vld [vmem:[#allocation14 + $0x1f0] sm:$0xff]
        %v2158 = vld [vmem:[#allocation14 + $0x1f8] sm:$0xff]
        %v2159 = vld [vmem:[#allocation14 + $0x200] sm:$0xff]
        %v2160 = vld [vmem:[#allocation14 + $0x208] sm:$0xff]
        %v2161 = vld [vmem:[#allocation14 + $0x210] sm:$0xff]
        %v2162 = vld [vmem:[#allocation14 + $0x218] sm:$0xff]
        %v2163 = vld [vmem:[#allocation14 + $0x220] sm:$0xff]
        %v2164 = vld [vmem:[#allocation14 + $0x228] sm:$0xff]
        %v2165 = vld [vmem:[#allocation14 + $0x230] sm:$0xff]
        %v2166 = vld [vmem:[#allocation14 + $0x238] sm:$0xff]
        %v2167 = vld [vmem:[#allocation14 + $0x240] sm:$0xff]
        %v2168 = vld [vmem:[#allocation14 + $0x248] sm:$0xff]
        %v2169 = vld [vmem:[#allocation14 + $0x250] sm:$0xff]
        %v2170 = vld [vmem:[#allocation14 + $0x258] sm:$0xff]
        %v2171 = vld [vmem:[#allocation14 + $0x260] sm:$0xff]
        %v2172 = vld [vmem:[#allocation14 + $0x268] sm:$0xff]
        %v2173 = vld [vmem:[#allocation14 + $0x270] sm:$0xff]
        %v2174 = vld [vmem:[#allocation14 + $0x278] sm:$0xff]
        %v2175 = vld [vmem:[#allocation14 + $0x280] sm:$0xff]
        %v2176 = vld [vmem:[#allocation14 + $0x288] sm:$0xff]
        %v2177 = vld [vmem:[#allocation14 + $0x290] sm:$0xff]
        %v2178 = vld [vmem:[#allocation14 + $0x298] sm:$0xff]
        %v2179 = vld [vmem:[#allocation14 + $0x2a0] sm:$0xff]
        %v2180 = vld [vmem:[#allocation14 + $0x2a8] sm:$0xff]
        %v2181 = vld [vmem:[#allocation14 + $0x2b0] sm:$0xff]
        %v2182 = vld [vmem:[#allocation14 + $0x2b8] sm:$0xff]
        %v2183 = vld [vmem:[#allocation14 + $0x2c0] sm:$0xff]
        %v2184 = vld [vmem:[#allocation14 + $0x2c8] sm:$0xff]
        %v2185 = vld [vmem:[#allocation14 + $0x2d0] sm:$0xff]
        %v2186 = vld [vmem:[#allocation14 + $0x2d8] sm:$0xff]
        %v2187 = vld [vmem:[#allocation14 + $0x2e0] sm:$0xff]
        %v2188 = vld [vmem:[#allocation14 + $0x2e8] sm:$0xff]
        %v2189 = vld [vmem:[#allocation14 + $0x2f0] sm:$0xff]
        %v2190 = vld [vmem:[#allocation14 + $0x2f8] sm:$0xff]
        %v2191 = vld [vmem:[#allocation14 + $0x300] sm:$0xff]
        %v2192 = vld [vmem:[#allocation14 + $0x308] sm:$0xff]
        %v2193 = vld [vmem:[#allocation14 + $0x310] sm:$0xff]
        %v2194 = vld [vmem:[#allocation14 + $0x318] sm:$0xff]
        %v2195 = vld [vmem:[#allocation14 + $0x320] sm:$0xff]
        %v2196 = vld [vmem:[#allocation14 + $0x328] sm:$0xff]
        %v2197 = vld [vmem:[#allocation14 + $0x330] sm:$0xff]
        %v2198 = vld [vmem:[#allocation14 + $0x338] sm:$0xff]
        %v2199 = vld [vmem:[#allocation14 + $0x340] sm:$0xff]
        %v2200 = vld [vmem:[#allocation14 + $0x348] sm:$0xff]
        %v2201 = vld [vmem:[#allocation14 + $0x350] sm:$0xff]
        %v2202 = vld [vmem:[#allocation14 + $0x358] sm:$0xff]
        %v2203 = vld [vmem:[#allocation14 + $0x360] sm:$0xff]
        %v2204 = vld [vmem:[#allocation14 + $0x368] sm:$0xff]
        %v2205 = vld [vmem:[#allocation14 + $0x370] sm:$0xff]
        %v2206 = vld [vmem:[#allocation14 + $0x378] sm:$0xff]
        %v2207 = vld [vmem:[#allocation14 + $0x380] sm:$0xff]
        %v2208 = vld [vmem:[#allocation14 + $0x388] sm:$0xff]
        %v2209 = vld [vmem:[#allocation14 + $0x390] sm:$0xff]
        %v2210 = vld [vmem:[#allocation14 + $0x398] sm:$0xff]
        %v2211 = vld [vmem:[#allocation14 + $0x3a0] sm:$0xff]
        %v2212 = vld [vmem:[#allocation14 + $0x3a8] sm:$0xff]
        %v2213 = vld [vmem:[#allocation14 + $0x3b0] sm:$0xff]
        %v2214 = vld [vmem:[#allocation14 + $0x3b8] sm:$0xff]
        %v2215 = vld [vmem:[#allocation14 + $0x3c0] sm:$0xff]
        %v2216 = vld [vmem:[#allocation14 + $0x3c8] sm:$0xff]
        %v2217 = vld [vmem:[#allocation14 + $0x3d0] sm:$0xff]
        %v2218 = vld [vmem:[#allocation14 + $0x3d8] sm:$0xff]
        %v2219 = vld [vmem:[#allocation14 + $0x3e0] sm:$0xff]
        %v2220 = vld [vmem:[#allocation14 + $0x3e8] sm:$0xff]
        %v2221 = vld [vmem:[#allocation14 + $0x3f0] sm:$0xff]
        %v2222 = vld [vmem:[#allocation14 + $0x3f8] sm:$0xff]
        %v2223 = vld [vmem:[#allocation16] sm:$0xff]
        %v2225 = vperm.slane %v2223, 0
        %v2226 = vperm.slane %v2223, 1
        %v2227 = vperm.slane %v2223, 2
        %v2228 = vperm.slane %v2223, 3
        %v2229 = vperm.slane %v2223, 4
        %v2230 = vperm.slane %v2223, 5
        %v2231 = vperm.slane %v2223, 6
        %v2232 = vperm.slane %v2223, 7
        %v2369 = vunpack.c.l.b16 %v2095
        %v2370 = vunpack.c.h.b16 %v2095
        %v2371 = vunpack.c.l.b16 %v2096
        %v2372 = vunpack.c.h.b16 %v2096
        %v2373 = vunpack.c.l.b16 %v2097
        %v2374 = vunpack.c.h.b16 %v2097
        %v2375 = vunpack.c.l.b16 %v2098
        %v2376 = vunpack.c.h.b16 %v2098
        %v2377 = vunpack.c.l.b16 %v2099
        %v2378 = vunpack.c.h.b16 %v2099
        %v2379 = vunpack.c.l.b16 %v2100
        %v2380 = vunpack.c.h.b16 %v2100
        %v2381 = vunpack.c.l.b16 %v2101
        %v2382 = vunpack.c.h.b16 %v2101
        %v2383 = vunpack.c.l.b16 %v2102
        %v2384 = vunpack.c.h.b16 %v2102
        %v2385 = vunpack.c.l.b16 %v2103
        %v2386 = vunpack.c.h.b16 %v2103
        %v2387 = vunpack.c.l.b16 %v2104
        %v2388 = vunpack.c.h.b16 %v2104
        %v2389 = vunpack.c.l.b16 %v2105
        %v2390 = vunpack.c.h.b16 %v2105
        %v2391 = vunpack.c.l.b16 %v2106
        %v2392 = vunpack.c.h.b16 %v2106
        %v2393 = vunpack.c.l.b16 %v2107
        %v2394 = vunpack.c.h.b16 %v2107
        %v2395 = vunpack.c.l.b16 %v2108
        %v2396 = vunpack.c.h.b16 %v2108
        %v2397 = vunpack.c.l.b16 %v2109
        %v2398 = vunpack.c.h.b16 %v2109
        %v2399 = vunpack.c.l.b16 %v2110
        %v2400 = vunpack.c.h.b16 %v2110
        %v2401 = vunpack.c.l.b16 %v2111
        %v2402 = vunpack.c.h.b16 %v2111
        %v2403 = vunpack.c.l.b16 %v2112
        %v2404 = vunpack.c.h.b16 %v2112
        %v2405 = vunpack.c.l.b16 %v2113
        %v2406 = vunpack.c.h.b16 %v2113
        %v2407 = vunpack.c.l.b16 %v2114
        %v2408 = vunpack.c.h.b16 %v2114
        %v2409 = vunpack.c.l.b16 %v2115
        %v2410 = vunpack.c.h.b16 %v2115
        %v2411 = vunpack.c.l.b16 %v2116
        %v2412 = vunpack.c.h.b16 %v2116
        %v2413 = vunpack.c.l.b16 %v2117
        %v2414 = vunpack.c.h.b16 %v2117
        %v2415 = vunpack.c.l.b16 %v2118
        %v2416 = vunpack.c.h.b16 %v2118
        %v2417 = vunpack.c.l.b16 %v2119
        %v2418 = vunpack.c.h.b16 %v2119
        %v2419 = vunpack.c.l.b16 %v2120
        %v2420 = vunpack.c.h.b16 %v2120
        %v2421 = vunpack.c.l.b16 %v2121
        %v2422 = vunpack.c.h.b16 %v2121
        %v2423 = vunpack.c.l.b16 %v2122
        %v2424 = vunpack.c.h.b16 %v2122
        %v2425 = vunpack.c.l.b16 %v2123
        %v2426 = vunpack.c.h.b16 %v2123
        %v2427 = vunpack.c.l.b16 %v2124
        %v2428 = vunpack.c.h.b16 %v2124
        %v2429 = vunpack.c.l.b16 %v2125
        %v2430 = vunpack.c.h.b16 %v2125
        %v2431 = vunpack.c.l.b16 %v2126
        %v2432 = vunpack.c.h.b16 %v2126
        %v2433 = vunpack.c.l.b16 %v2127
        %v2434 = vunpack.c.h.b16 %v2127
        %v2435 = vunpack.c.l.b16 %v2128
        %v2436 = vunpack.c.h.b16 %v2128
        %v2437 = vunpack.c.l.b16 %v2129
        %v2438 = vunpack.c.h.b16 %v2129
        %v2439 = vunpack.c.l.b16 %v2130
        %v2440 = vunpack.c.h.b16 %v2130
        %v2441 = vunpack.c.l.b16 %v2131
        %v2442 = vunpack.c.h.b16 %v2131
        %v2443 = vunpack.c.l.b16 %v2132
        %v2444 = vunpack.c.h.b16 %v2132
        %v2445 = vunpack.c.l.b16 %v2133
        %v2446 = vunpack.c.h.b16 %v2133
        %v2447 = vunpack.c.l.b16 %v2134
        %v2448 = vunpack.c.h.b16 %v2134
        %v2449 = vunpack.c.l.b16 %v2135
        %v2450 = vunpack.c.h.b16 %v2135
        %v2451 = vunpack.c.l.b16 %v2136
        %v2452 = vunpack.c.h.b16 %v2136
        %v2453 = vunpack.c.l.b16 %v2137
        %v2454 = vunpack.c.h.b16 %v2137
        %v2455 = vunpack.c.l.b16 %v2138
        %v2456 = vunpack.c.h.b16 %v2138
        %v2457 = vunpack.c.l.b16 %v2139
        %v2458 = vunpack.c.h.b16 %v2139
        %v2459 = vunpack.c.l.b16 %v2140
        %v2460 = vunpack.c.h.b16 %v2140
        %v2461 = vunpack.c.l.b16 %v2141
        %v2462 = vunpack.c.h.b16 %v2141
        %v2463 = vunpack.c.l.b16 %v2142
        %v2464 = vunpack.c.h.b16 %v2142
        %v2465 = vunpack.c.l.b16 %v2143
        %v2466 = vunpack.c.h.b16 %v2143
        %v2467 = vunpack.c.l.b16 %v2144
        %v2468 = vunpack.c.h.b16 %v2144
        %v2469 = vunpack.c.l.b16 %v2145
        %v2470 = vunpack.c.h.b16 %v2145
        %v2471 = vunpack.c.l.b16 %v2146
        %v2472 = vunpack.c.h.b16 %v2146
        %v2473 = vunpack.c.l.b16 %v2147
        %v2474 = vunpack.c.h.b16 %v2147
        %v2475 = vunpack.c.l.b16 %v2148
        %v2476 = vunpack.c.h.b16 %v2148
        %v2477 = vunpack.c.l.b16 %v2149
        %v2478 = vunpack.c.h.b16 %v2149
        %v2479 = vunpack.c.l.b16 %v2150
        %v2480 = vunpack.c.h.b16 %v2150
        %v2481 = vunpack.c.l.b16 %v2151
        %v2482 = vunpack.c.h.b16 %v2151
        %v2483 = vunpack.c.l.b16 %v2152
        %v2484 = vunpack.c.h.b16 %v2152
        %v2485 = vunpack.c.l.b16 %v2153
        %v2486 = vunpack.c.h.b16 %v2153
        %v2487 = vunpack.c.l.b16 %v2154
        %v2488 = vunpack.c.h.b16 %v2154
        %v2489 = vunpack.c.l.b16 %v2155
        %v2490 = vunpack.c.h.b16 %v2155
        %v2491 = vunpack.c.l.b16 %v2156
        %v2492 = vunpack.c.h.b16 %v2156
        %v2493 = vunpack.c.l.b16 %v2157
        %v2494 = vunpack.c.h.b16 %v2157
        %v2495 = vunpack.c.l.b16 %v2158
        %v2496 = vunpack.c.h.b16 %v2158
        %v2497 = vunpack.c.l.b16 %v2159
        %v2498 = vunpack.c.h.b16 %v2159
        %v2499 = vunpack.c.l.b16 %v2160
        %v2500 = vunpack.c.h.b16 %v2160
        %v2501 = vunpack.c.l.b16 %v2161
        %v2502 = vunpack.c.h.b16 %v2161
        %v2503 = vunpack.c.l.b16 %v2162
        %v2504 = vunpack.c.h.b16 %v2162
        %v2505 = vunpack.c.l.b16 %v2163
        %v2506 = vunpack.c.h.b16 %v2163
        %v2507 = vunpack.c.l.b16 %v2164
        %v2508 = vunpack.c.h.b16 %v2164
        %v2509 = vunpack.c.l.b16 %v2165
        %v2510 = vunpack.c.h.b16 %v2165
        %v2511 = vunpack.c.l.b16 %v2166
        %v2512 = vunpack.c.h.b16 %v2166
        %v2513 = vunpack.c.l.b16 %v2167
        %v2514 = vunpack.c.h.b16 %v2167
        %v2515 = vunpack.c.l.b16 %v2168
        %v2516 = vunpack.c.h.b16 %v2168
        %v2517 = vunpack.c.l.b16 %v2169
        %v2518 = vunpack.c.h.b16 %v2169
        %v2519 = vunpack.c.l.b16 %v2170
        %v2520 = vunpack.c.h.b16 %v2170
        %v2521 = vunpack.c.l.b16 %v2171
        %v2522 = vunpack.c.h.b16 %v2171
        %v2523 = vunpack.c.l.b16 %v2172
        %v2524 = vunpack.c.h.b16 %v2172
        %v2525 = vunpack.c.l.b16 %v2173
        %v2526 = vunpack.c.h.b16 %v2173
        %v2527 = vunpack.c.l.b16 %v2174
        %v2528 = vunpack.c.h.b16 %v2174
        %v2529 = vunpack.c.l.b16 %v2175
        %v2530 = vunpack.c.h.b16 %v2175
        %v2531 = vunpack.c.l.b16 %v2176
        %v2532 = vunpack.c.h.b16 %v2176
        %v2533 = vunpack.c.l.b16 %v2177
        %v2534 = vunpack.c.h.b16 %v2177
        %v2535 = vunpack.c.l.b16 %v2178
        %v2536 = vunpack.c.h.b16 %v2178
        %v2537 = vunpack.c.l.b16 %v2179
        %v2538 = vunpack.c.h.b16 %v2179
        %v2539 = vunpack.c.l.b16 %v2180
        %v2540 = vunpack.c.h.b16 %v2180
        %v2541 = vunpack.c.l.b16 %v2181
        %v2542 = vunpack.c.h.b16 %v2181
        %v2543 = vunpack.c.l.b16 %v2182
        %v2544 = vunpack.c.h.b16 %v2182
        %v2545 = vunpack.c.l.b16 %v2183
        %v2546 = vunpack.c.h.b16 %v2183
        %v2547 = vunpack.c.l.b16 %v2184
        %v2548 = vunpack.c.h.b16 %v2184
        %v2549 = vunpack.c.l.b16 %v2185
        %v2550 = vunpack.c.h.b16 %v2185
        %v2551 = vunpack.c.l.b16 %v2186
        %v2552 = vunpack.c.h.b16 %v2186
        %v2553 = vunpack.c.l.b16 %v2187
        %v2554 = vunpack.c.h.b16 %v2187
        %v2555 = vunpack.c.l.b16 %v2188
        %v2556 = vunpack.c.h.b16 %v2188
        %v2557 = vunpack.c.l.b16 %v2189
        %v2558 = vunpack.c.h.b16 %v2189
        %v2559 = vunpack.c.l.b16 %v2190
        %v2560 = vunpack.c.h.b16 %v2190
        %v2561 = vunpack.c.l.b16 %v2191
        %v2562 = vunpack.c.h.b16 %v2191
        %v2563 = vunpack.c.l.b16 %v2192
        %v2564 = vunpack.c.h.b16 %v2192
        %v2565 = vunpack.c.l.b16 %v2193
        %v2566 = vunpack.c.h.b16 %v2193
        %v2567 = vunpack.c.l.b16 %v2194
        %v2568 = vunpack.c.h.b16 %v2194
        %v2569 = vunpack.c.l.b16 %v2195
        %v2570 = vunpack.c.h.b16 %v2195
        %v2571 = vunpack.c.l.b16 %v2196
        %v2572 = vunpack.c.h.b16 %v2196
        %v2573 = vunpack.c.l.b16 %v2197
        %v2574 = vunpack.c.h.b16 %v2197
        %v2575 = vunpack.c.l.b16 %v2198
        %v2576 = vunpack.c.h.b16 %v2198
        %v2577 = vunpack.c.l.b16 %v2199
        %v2578 = vunpack.c.h.b16 %v2199
        %v2579 = vunpack.c.l.b16 %v2200
        %v2580 = vunpack.c.h.b16 %v2200
        %v2581 = vunpack.c.l.b16 %v2201
        %v2582 = vunpack.c.h.b16 %v2201
        %v2583 = vunpack.c.l.b16 %v2202
        %v2584 = vunpack.c.h.b16 %v2202
        %v2585 = vunpack.c.l.b16 %v2203
        %v2586 = vunpack.c.h.b16 %v2203
        %v2587 = vunpack.c.l.b16 %v2204
        %v2588 = vunpack.c.h.b16 %v2204
        %v2589 = vunpack.c.l.b16 %v2205
        %v2590 = vunpack.c.h.b16 %v2205
        %v2591 = vunpack.c.l.b16 %v2206
        %v2592 = vunpack.c.h.b16 %v2206
        %v2593 = vunpack.c.l.b16 %v2207
        %v2594 = vunpack.c.h.b16 %v2207
        %v2595 = vunpack.c.l.b16 %v2208
        %v2596 = vunpack.c.h.b16 %v2208
        %v2597 = vunpack.c.l.b16 %v2209
        %v2598 = vunpack.c.h.b16 %v2209
        %v2599 = vunpack.c.l.b16 %v2210
        %v2600 = vunpack.c.h.b16 %v2210
        %v2601 = vunpack.c.l.b16 %v2211
        %v2602 = vunpack.c.h.b16 %v2211
        %v2603 = vunpack.c.l.b16 %v2212
        %v2604 = vunpack.c.h.b16 %v2212
        %v2605 = vunpack.c.l.b16 %v2213
        %v2606 = vunpack.c.h.b16 %v2213
        %v2607 = vunpack.c.l.b16 %v2214
        %v2608 = vunpack.c.h.b16 %v2214
        %v2609 = vunpack.c.l.b16 %v2215
        %v2610 = vunpack.c.h.b16 %v2215
        %v2611 = vunpack.c.l.b16 %v2216
        %v2612 = vunpack.c.h.b16 %v2216
        %v2613 = vunpack.c.l.b16 %v2217
        %v2614 = vunpack.c.h.b16 %v2217
        %v2615 = vunpack.c.l.b16 %v2218
        %v2616 = vunpack.c.h.b16 %v2218
        %v2617 = vunpack.c.l.b16 %v2219
        %v2618 = vunpack.c.h.b16 %v2219
        %v2619 = vunpack.c.l.b16 %v2220
        %v2620 = vunpack.c.h.b16 %v2220
        %v2621 = vunpack.c.l.b16 %v2221
        %v2622 = vunpack.c.h.b16 %v2221
        %v2623 = vunpack.c.l.b16 %v2222
        %v2624 = vunpack.c.h.b16 %v2222
        %v2625 = vpack.c.b16 %v2377, %v2369
        %v2626 = vpack.c.b16 %v2378, %v2370
        %v2627 = vpack.c.b16 %v2379, %v2371
        %v2628 = vpack.c.b16 %v2380, %v2372
        %v2629 = vpack.c.b16 %v2381, %v2373
        %v2630 = vpack.c.b16 %v2382, %v2374
        %v2631 = vpack.c.b16 %v2383, %v2375
        %v2632 = vpack.c.b16 %v2384, %v2376
        %v2633 = vpack.c.b16 %v2393, %v2385
        %v2634 = vpack.c.b16 %v2394, %v2386
        %v2635 = vpack.c.b16 %v2395, %v2387
        %v2636 = vpack.c.b16 %v2396, %v2388
        %v2637 = vpack.c.b16 %v2397, %v2389
        %v2638 = vpack.c.b16 %v2398, %v2390
        %v2639 = vpack.c.b16 %v2399, %v2391
        %v2640 = vpack.c.b16 %v2400, %v2392
        %v2641 = vpack.c.b16 %v2409, %v2401
        %v2642 = vpack.c.b16 %v2410, %v2402
        %v2643 = vpack.c.b16 %v2411, %v2403
        %v2644 = vpack.c.b16 %v2412, %v2404
        %v2645 = vpack.c.b16 %v2413, %v2405
        %v2646 = vpack.c.b16 %v2414, %v2406
        %v2647 = vpack.c.b16 %v2415, %v2407
        %v2648 = vpack.c.b16 %v2416, %v2408
        %v2649 = vpack.c.b16 %v2425, %v2417
        %v2650 = vpack.c.b16 %v2426, %v2418
        %v2651 = vpack.c.b16 %v2427, %v2419
        %v2652 = vpack.c.b16 %v2428, %v2420
        %v2653 = vpack.c.b16 %v2429, %v2421
        %v2654 = vpack.c.b16 %v2430, %v2422
        %v2655 = vpack.c.b16 %v2431, %v2423
        %v2656 = vpack.c.b16 %v2432, %v2424
        %v2657 = vpack.c.b16 %v2441, %v2433
        %v2658 = vpack.c.b16 %v2442, %v2434
        %v2659 = vpack.c.b16 %v2443, %v2435
        %v2660 = vpack.c.b16 %v2444, %v2436
        %v2661 = vpack.c.b16 %v2445, %v2437
        %v2662 = vpack.c.b16 %v2446, %v2438
        %v2663 = vpack.c.b16 %v2447, %v2439
        %v2664 = vpack.c.b16 %v2448, %v2440
        %v2665 = vpack.c.b16 %v2457, %v2449
        %v2666 = vpack.c.b16 %v2458, %v2450
        %v2667 = vpack.c.b16 %v2459, %v2451
        %v2668 = vpack.c.b16 %v2460, %v2452
        %v2669 = vpack.c.b16 %v2461, %v2453
        %v2670 = vpack.c.b16 %v2462, %v2454
        %v2671 = vpack.c.b16 %v2463, %v2455
        %v2672 = vpack.c.b16 %v2464, %v2456
        %v2673 = vpack.c.b16 %v2473, %v2465
        %v2674 = vpack.c.b16 %v2474, %v2466
        %v2675 = vpack.c.b16 %v2475, %v2467
        %v2676 = vpack.c.b16 %v2476, %v2468
        %v2677 = vpack.c.b16 %v2477, %v2469
        %v2678 = vpack.c.b16 %v2478, %v2470
        %v2679 = vpack.c.b16 %v2479, %v2471
        %v2680 = vpack.c.b16 %v2480, %v2472
        %v2681 = vpack.c.b16 %v2489, %v2481
        %v2682 = vpack.c.b16 %v2490, %v2482
        %v2683 = vpack.c.b16 %v2491, %v2483
        %v2684 = vpack.c.b16 %v2492, %v2484
        %v2685 = vpack.c.b16 %v2493, %v2485
        %v2686 = vpack.c.b16 %v2494, %v2486
        %v2687 = vpack.c.b16 %v2495, %v2487
        %v2688 = vpack.c.b16 %v2496, %v2488
        %v2689 = vpack.c.b16 %v2505, %v2497
        %v2690 = vpack.c.b16 %v2506, %v2498
        %v2691 = vpack.c.b16 %v2507, %v2499
        %v2692 = vpack.c.b16 %v2508, %v2500
        %v2693 = vpack.c.b16 %v2509, %v2501
        %v2694 = vpack.c.b16 %v2510, %v2502
        %v2695 = vpack.c.b16 %v2511, %v2503
        %v2696 = vpack.c.b16 %v2512, %v2504
        %v2697 = vpack.c.b16 %v2521, %v2513
        %v2698 = vpack.c.b16 %v2522, %v2514
        %v2699 = vpack.c.b16 %v2523, %v2515
        %v2700 = vpack.c.b16 %v2524, %v2516
        %v2701 = vpack.c.b16 %v2525, %v2517
        %v2702 = vpack.c.b16 %v2526, %v2518
        %v2703 = vpack.c.b16 %v2527, %v2519
        %v2704 = vpack.c.b16 %v2528, %v2520
        %v2705 = vpack.c.b16 %v2537, %v2529
        %v2706 = vpack.c.b16 %v2538, %v2530
        %v2707 = vpack.c.b16 %v2539, %v2531
        %v2708 = vpack.c.b16 %v2540, %v2532
        %v2709 = vpack.c.b16 %v2541, %v2533
        %v2710 = vpack.c.b16 %v2542, %v2534
        %v2711 = vpack.c.b16 %v2543, %v2535
        %v2712 = vpack.c.b16 %v2544, %v2536
        %v2713 = vpack.c.b16 %v2553, %v2545
        %v2714 = vpack.c.b16 %v2554, %v2546
        %v2715 = vpack.c.b16 %v2555, %v2547
        %v2716 = vpack.c.b16 %v2556, %v2548
        %v2717 = vpack.c.b16 %v2557, %v2549
        %v2718 = vpack.c.b16 %v2558, %v2550
        %v2719 = vpack.c.b16 %v2559, %v2551
        %v2720 = vpack.c.b16 %v2560, %v2552
        %v2721 = vpack.c.b16 %v2569, %v2561
        %v2722 = vpack.c.b16 %v2570, %v2562
        %v2723 = vpack.c.b16 %v2571, %v2563
        %v2724 = vpack.c.b16 %v2572, %v2564
        %v2725 = vpack.c.b16 %v2573, %v2565
        %v2726 = vpack.c.b16 %v2574, %v2566
        %v2727 = vpack.c.b16 %v2575, %v2567
        %v2728 = vpack.c.b16 %v2576, %v2568
        %v2729 = vpack.c.b16 %v2585, %v2577
        %v2730 = vpack.c.b16 %v2586, %v2578
        %v2731 = vpack.c.b16 %v2587, %v2579
        %v2732 = vpack.c.b16 %v2588, %v2580
        %v2733 = vpack.c.b16 %v2589, %v2581
        %v2734 = vpack.c.b16 %v2590, %v2582
        %v2735 = vpack.c.b16 %v2591, %v2583
        %v2736 = vpack.c.b16 %v2592, %v2584
        %v2737 = vpack.c.b16 %v2601, %v2593
        %v2738 = vpack.c.b16 %v2602, %v2594
        %v2739 = vpack.c.b16 %v2603, %v2595
        %v2740 = vpack.c.b16 %v2604, %v2596
        %v2741 = vpack.c.b16 %v2605, %v2597
        %v2742 = vpack.c.b16 %v2606, %v2598
        %v2743 = vpack.c.b16 %v2607, %v2599
        %v2744 = vpack.c.b16 %v2608, %v2600
        %v2745 = vpack.c.b16 %v2617, %v2609
        %v2746 = vpack.c.b16 %v2618, %v2610
        %v2747 = vpack.c.b16 %v2619, %v2611
        %v2748 = vpack.c.b16 %v2620, %v2612
        %v2749 = vpack.c.b16 %v2621, %v2613
        %v2750 = vpack.c.b16 %v2622, %v2614
        %v2751 = vpack.c.b16 %v2623, %v2615
        %v2752 = vpack.c.b16 %v2624, %v2616
        %2881 = vmatpush.bf16.msra.mxu0 %v2681
        %2882 = vmatpush.bf16.msra.mxu0 %v2673
        %2883 = vmatpush.bf16.msra.mxu0 %v2665
        %2884 = vmatpush.bf16.msra.mxu0 %v2657
        %2885 = vmatpush.bf16.msra.mxu0 %v2649
        %2886 = vmatpush.bf16.msra.mxu0 %v2641
        %2887 = vmatpush.bf16.msra.mxu0 %v2633
        %2888 = vmatpush.bf16.msra.mxu0 %v2625
        %2889 = vmatmul.bf16.gmra.mxu0 %v2091
        %v2890 = vpop.f32.mrf.mxu0
        %v2891 = vadd.f32 %v2225, %v2890
        %v2892 = vpop.f32.mrf.mxu0
        %v2893 = vadd.f32 %v2225, %v2892
        %2894 = vmatmul.bf16.gmra.mxu0 %v2093
        %v2895 = vpop.f32.mrf.mxu0
        %v2896 = vadd.f32 %v2225, %v2895
        %v2897 = vpop.f32.mrf.mxu0
        %v2898 = vadd.f32 %v2225, %v2897
        %2899 = vdwg.mxu0
        %2900 = vmatpush.bf16.msra.mxu0 %v2745
        %2901 = vmatpush.bf16.msra.mxu0 %v2737
        %2902 = vmatpush.bf16.msra.mxu0 %v2729
        %2903 = vmatpush.bf16.msra.mxu0 %v2721
        %2904 = vmatpush.bf16.msra.mxu0 %v2713
        %2905 = vmatpush.bf16.msra.mxu0 %v2705
        %2906 = vmatpush.bf16.msra.mxu0 %v2697
        %2907 = vmatpush.bf16.msra.mxu0 %v2689
        %2908 = vmatmul.bf16.gmra.mxu0 %v2092
        %v2909 = vpop.f32.mrf.mxu0
        %v2910 = vadd.f32 %v2891, %v2909
        %v2911 = vpop.f32.mrf.mxu0
        %v2912 = vadd.f32 %v2893, %v2911
        %2913 = vmatmul.bf16.gmra.mxu0 %v2094
        %v2914 = vpop.f32.mrf.mxu0
        %v2915 = vadd.f32 %v2896, %v2914
        %v2916 = vpop.f32.mrf.mxu0
        %v2917 = vadd.f32 %v2898, %v2916
        %2918 = vdwg.mxu0
        %2919 = vmatpush.bf16.msra.mxu0 %v2682
        %2920 = vmatpush.bf16.msra.mxu0 %v2674
        %2921 = vmatpush.bf16.msra.mxu0 %v2666
        %2922 = vmatpush.bf16.msra.mxu0 %v2658
        %2923 = vmatpush.bf16.msra.mxu0 %v2650
        %2924 = vmatpush.bf16.msra.mxu0 %v2642
        %2925 = vmatpush.bf16.msra.mxu0 %v2634
        %2926 = vmatpush.bf16.msra.mxu0 %v2626
        %2927 = vmatmul.bf16.gmra.mxu0 %v2091
        %v2928 = vpop.f32.mrf.mxu0
        %v2929 = vadd.f32 %v2226, %v2928
        %v2930 = vpop.f32.mrf.mxu0
        %v2931 = vadd.f32 %v2226, %v2930
        %2932 = vmatmul.bf16.gmra.mxu0 %v2093
        %v2933 = vpop.f32.mrf.mxu0
        %v2934 = vadd.f32 %v2226, %v2933
        %v2935 = vpop.f32.mrf.mxu0
        %v2936 = vadd.f32 %v2226, %v2935
        %2937 = vdwg.mxu0
        %2938 = vmatpush.bf16.msra.mxu0 %v2746
        %2939 = vmatpush.bf16.msra.mxu0 %v2738
        %2940 = vmatpush.bf16.msra.mxu0 %v2730
        %2941 = vmatpush.bf16.msra.mxu0 %v2722
        %2942 = vmatpush.bf16.msra.mxu0 %v2714
        %2943 = vmatpush.bf16.msra.mxu0 %v2706
        %2944 = vmatpush.bf16.msra.mxu0 %v2698
        %2945 = vmatpush.bf16.msra.mxu0 %v2690
        %2946 = vmatmul.bf16.gmra.mxu0 %v2092
        %v2947 = vpop.f32.mrf.mxu0
        %v2948 = vadd.f32 %v2929, %v2947
        %v2949 = vpop.f32.mrf.mxu0
        %v2950 = vadd.f32 %v2931, %v2949
        %2951 = vmatmul.bf16.gmra.mxu0 %v2094
        %v2952 = vpop.f32.mrf.mxu0
        %v2953 = vadd.f32 %v2934, %v2952
        %v2954 = vpop.f32.mrf.mxu0
        %v2955 = vadd.f32 %v2936, %v2954
        %2956 = vdwg.mxu0
        %2957 = vmatpush.bf16.msra.mxu0 %v2683
        %2958 = vmatpush.bf16.msra.mxu0 %v2675
        %2959 = vmatpush.bf16.msra.mxu0 %v2667
        %2960 = vmatpush.bf16.msra.mxu0 %v2659
        %2961 = vmatpush.bf16.msra.mxu0 %v2651
        %2962 = vmatpush.bf16.msra.mxu0 %v2643
        %2963 = vmatpush.bf16.msra.mxu0 %v2635
        %2964 = vmatpush.bf16.msra.mxu0 %v2627
        %2965 = vmatmul.bf16.gmra.mxu0 %v2091
        %v2966 = vpop.f32.mrf.mxu0
        %v2967 = vadd.f32 %v2227, %v2966
        %v2968 = vpop.f32.mrf.mxu0
        %v2969 = vadd.f32 %v2227, %v2968
        %2970 = vmatmul.bf16.gmra.mxu0 %v2093
        %v2971 = vpop.f32.mrf.mxu0
        %v2972 = vadd.f32 %v2227, %v2971
        %v2973 = vpop.f32.mrf.mxu0
        %v2974 = vadd.f32 %v2227, %v2973
        %2975 = vdwg.mxu0
        %2976 = vmatpush.bf16.msra.mxu0 %v2747
        %2977 = vmatpush.bf16.msra.mxu0 %v2739
        %2978 = vmatpush.bf16.msra.mxu0 %v2731
        %2979 = vmatpush.bf16.msra.mxu0 %v2723
        %2980 = vmatpush.bf16.msra.mxu0 %v2715
        %2981 = vmatpush.bf16.msra.mxu0 %v2707
        %2982 = vmatpush.bf16.msra.mxu0 %v2699
        %2983 = vmatpush.bf16.msra.mxu0 %v2691
        %2984 = vmatmul.bf16.gmra.mxu0 %v2092
        %v2985 = vpop.f32.mrf.mxu0
        %v2986 = vadd.f32 %v2967, %v2985
        %v2987 = vpop.f32.mrf.mxu0
        %v2988 = vadd.f32 %v2969, %v2987
        %2989 = vmatmul.bf16.gmra.mxu0 %v2094
        %v2990 = vpop.f32.mrf.mxu0
        %v2991 = vadd.f32 %v2972, %v2990
        %v2992 = vpop.f32.mrf.mxu0
        %v2993 = vadd.f32 %v2974, %v2992
        %2994 = vdwg.mxu0
        %2995 = vmatpush.bf16.msra.mxu0 %v2684
        %2996 = vmatpush.bf16.msra.mxu0 %v2676
        %2997 = vmatpush.bf16.msra.mxu0 %v2668
        %2998 = vmatpush.bf16.msra.mxu0 %v2660
        %2999 = vmatpush.bf16.msra.mxu0 %v2652
        %3000 = vmatpush.bf16.msra.mxu0 %v2644
        %3001 = vmatpush.bf16.msra.mxu0 %v2636
        %3002 = vmatpush.bf16.msra.mxu0 %v2628
        %3003 = vmatmul.bf16.gmra.mxu0 %v2091
        %v3004 = vpop.f32.mrf.mxu0
        %v3005 = vadd.f32 %v2228, %v3004
        %v3006 = vpop.f32.mrf.mxu0
        %v3007 = vadd.f32 %v2228, %v3006
        %3008 = vmatmul.bf16.gmra.mxu0 %v2093
        %v3009 = vpop.f32.mrf.mxu0
        %v3010 = vadd.f32 %v2228, %v3009
        %v3011 = vpop.f32.mrf.mxu0
        %v3012 = vadd.f32 %v2228, %v3011
        %3013 = vdwg.mxu0
        %3014 = vmatpush.bf16.msra.mxu0 %v2748
        %3015 = vmatpush.bf16.msra.mxu0 %v2740
        %3016 = vmatpush.bf16.msra.mxu0 %v2732
        %3017 = vmatpush.bf16.msra.mxu0 %v2724
        %3018 = vmatpush.bf16.msra.mxu0 %v2716
        %3019 = vmatpush.bf16.msra.mxu0 %v2708
        %3020 = vmatpush.bf16.msra.mxu0 %v2700
        %3021 = vmatpush.bf16.msra.mxu0 %v2692
        %3022 = vmatmul.bf16.gmra.mxu0 %v2092
        %v3023 = vpop.f32.mrf.mxu0
        %v3024 = vadd.f32 %v3005, %v3023
        %v3025 = vpop.f32.mrf.mxu0
        %v3026 = vadd.f32 %v3007, %v3025
        %3027 = vmatmul.bf16.gmra.mxu0 %v2094
        %v3028 = vpop.f32.mrf.mxu0
        %v3029 = vadd.f32 %v3010, %v3028
        %v3030 = vpop.f32.mrf.mxu0
        %v3031 = vadd.f32 %v3012, %v3030
        %3032 = vdwg.mxu0
        %3033 = vmatpush.bf16.msra.mxu0 %v2685
        %3034 = vmatpush.bf16.msra.mxu0 %v2677
        %3035 = vmatpush.bf16.msra.mxu0 %v2669
        %3036 = vmatpush.bf16.msra.mxu0 %v2661
        %3037 = vmatpush.bf16.msra.mxu0 %v2653
        %3038 = vmatpush.bf16.msra.mxu0 %v2645
        %3039 = vmatpush.bf16.msra.mxu0 %v2637
        %3040 = vmatpush.bf16.msra.mxu0 %v2629
        %3041 = vmatmul.bf16.gmra.mxu0 %v2091
        %v3042 = vpop.f32.mrf.mxu0
        %v3043 = vadd.f32 %v2229, %v3042
        %v3044 = vpop.f32.mrf.mxu0
        %v3045 = vadd.f32 %v2229, %v3044
        %3046 = vmatmul.bf16.gmra.mxu0 %v2093
        %v3047 = vpop.f32.mrf.mxu0
        %v3048 = vadd.f32 %v2229, %v3047
        %v3049 = vpop.f32.mrf.mxu0
        %v3050 = vadd.f32 %v2229, %v3049
        %3051 = vdwg.mxu0
        %3052 = vmatpush.bf16.msra.mxu0 %v2749
        %3053 = vmatpush.bf16.msra.mxu0 %v2741
        %3054 = vmatpush.bf16.msra.mxu0 %v2733
        %3055 = vmatpush.bf16.msra.mxu0 %v2725
        %3056 = vmatpush.bf16.msra.mxu0 %v2717
        %3057 = vmatpush.bf16.msra.mxu0 %v2709
        %3058 = vmatpush.bf16.msra.mxu0 %v2701
        %3059 = vmatpush.bf16.msra.mxu0 %v2693
        %3060 = vmatmul.bf16.gmra.mxu0 %v2092
        %v3061 = vpop.f32.mrf.mxu0
        %v3062 = vadd.f32 %v3043, %v3061
        %v3063 = vpop.f32.mrf.mxu0
        %v3064 = vadd.f32 %v3045, %v3063
        %3065 = vmatmul.bf16.gmra.mxu0 %v2094
        %v3066 = vpop.f32.mrf.mxu0
        %v3067 = vadd.f32 %v3048, %v3066
        %v3068 = vpop.f32.mrf.mxu0
        %v3069 = vadd.f32 %v3050, %v3068
        %3070 = vdwg.mxu0
        %3071 = vmatpush.bf16.msra.mxu0 %v2686
        %3072 = vmatpush.bf16.msra.mxu0 %v2678
        %3073 = vmatpush.bf16.msra.mxu0 %v2670
        %3074 = vmatpush.bf16.msra.mxu0 %v2662
        %3075 = vmatpush.bf16.msra.mxu0 %v2654
        %3076 = vmatpush.bf16.msra.mxu0 %v2646
        %3077 = vmatpush.bf16.msra.mxu0 %v2638
        %3078 = vmatpush.bf16.msra.mxu0 %v2630
        %3079 = vmatmul.bf16.gmra.mxu0 %v2091
        %v3080 = vpop.f32.mrf.mxu0
        %v3081 = vadd.f32 %v2230, %v3080
        %v3082 = vpop.f32.mrf.mxu0
        %v3083 = vadd.f32 %v2230, %v3082
        %3084 = vmatmul.bf16.gmra.mxu0 %v2093
        %v3085 = vpop.f32.mrf.mxu0
        %v3086 = vadd.f32 %v2230, %v3085
        %v3087 = vpop.f32.mrf.mxu0
        %v3088 = vadd.f32 %v2230, %v3087
        %3089 = vdwg.mxu0
        %3090 = vmatpush.bf16.msra.mxu0 %v2750
        %3091 = vmatpush.bf16.msra.mxu0 %v2742
        %3092 = vmatpush.bf16.msra.mxu0 %v2734
        %3093 = vmatpush.bf16.msra.mxu0 %v2726
        %3094 = vmatpush.bf16.msra.mxu0 %v2718
        %3095 = vmatpush.bf16.msra.mxu0 %v2710
        %3096 = vmatpush.bf16.msra.mxu0 %v2702
        %3097 = vmatpush.bf16.msra.mxu0 %v2694
        %3098 = vmatmul.bf16.gmra.mxu0 %v2092
        %v3099 = vpop.f32.mrf.mxu0
        %v3100 = vadd.f32 %v3081, %v3099
        %v3101 = vpop.f32.mrf.mxu0
        %v3102 = vadd.f32 %v3083, %v3101
        %3103 = vmatmul.bf16.gmra.mxu0 %v2094
        %v3104 = vpop.f32.mrf.mxu0
        %v3105 = vadd.f32 %v3086, %v3104
        %v3106 = vpop.f32.mrf.mxu0
        %v3107 = vadd.f32 %v3088, %v3106
        %3108 = vdwg.mxu0
        %3109 = vmatpush.bf16.msra.mxu0 %v2687
        %3110 = vmatpush.bf16.msra.mxu0 %v2679
        %3111 = vmatpush.bf16.msra.mxu0 %v2671
        %3112 = vmatpush.bf16.msra.mxu0 %v2663
        %3113 = vmatpush.bf16.msra.mxu0 %v2655
        %3114 = vmatpush.bf16.msra.mxu0 %v2647
        %3115 = vmatpush.bf16.msra.mxu0 %v2639
        %3116 = vmatpush.bf16.msra.mxu0 %v2631
        %3117 = vmatmul.bf16.gmra.mxu0 %v2091
        %v3118 = vpop.f32.mrf.mxu0
        %v3119 = vadd.f32 %v2231, %v3118
        %v3120 = vpop.f32.mrf.mxu0
        %v3121 = vadd.f32 %v2231, %v3120
        %3122 = vmatmul.bf16.gmra.mxu0 %v2093
        %v3123 = vpop.f32.mrf.mxu0
        %v3124 = vadd.f32 %v2231, %v3123
        %v3125 = vpop.f32.mrf.mxu0
        %v3126 = vadd.f32 %v2231, %v3125
        %3127 = vdwg.mxu0
        %3128 = vmatpush.bf16.msra.mxu0 %v2751
        %3129 = vmatpush.bf16.msra.mxu0 %v2743
        %3130 = vmatpush.bf16.msra.mxu0 %v2735
        %3131 = vmatpush.bf16.msra.mxu0 %v2727
        %3132 = vmatpush.bf16.msra.mxu0 %v2719
        %3133 = vmatpush.bf16.msra.mxu0 %v2711
        %3134 = vmatpush.bf16.msra.mxu0 %v2703
        %3135 = vmatpush.bf16.msra.mxu0 %v2695
        %3136 = vmatmul.bf16.gmra.mxu0 %v2092
        %v3137 = vpop.f32.mrf.mxu0
        %v3138 = vadd.f32 %v3119, %v3137
        %v3139 = vpop.f32.mrf.mxu0
        %v3140 = vadd.f32 %v3121, %v3139
        %3141 = vmatmul.bf16.gmra.mxu0 %v2094
        %v3142 = vpop.f32.mrf.mxu0
        %v3143 = vadd.f32 %v3124, %v3142
        %v3144 = vpop.f32.mrf.mxu0
        %v3145 = vadd.f32 %v3126, %v3144
        %3146 = vdwg.mxu0
        %3147 = vmatpush.bf16.msra.mxu0 %v2688
        %3148 = vmatpush.bf16.msra.mxu0 %v2680
        %3149 = vmatpush.bf16.msra.mxu0 %v2672
        %3150 = vmatpush.bf16.msra.mxu0 %v2664
        %3151 = vmatpush.bf16.msra.mxu0 %v2656
        %3152 = vmatpush.bf16.msra.mxu0 %v2648
        %3153 = vmatpush.bf16.msra.mxu0 %v2640
        %3154 = vmatpush.bf16.msra.mxu0 %v2632
        %3155 = vmatmul.bf16.gmra.mxu0 %v2091
        %v3156 = vpop.f32.mrf.mxu0
        %v3157 = vadd.f32 %v2232, %v3156
        %v3158 = vpop.f32.mrf.mxu0
        %v3159 = vadd.f32 %v2232, %v3158
        %3160 = vmatmul.bf16.gmra.mxu0 %v2093
        %v3161 = vpop.f32.mrf.mxu0
        %v3162 = vadd.f32 %v2232, %v3161
        %v3163 = vpop.f32.mrf.mxu0
        %v3164 = vadd.f32 %v2232, %v3163
        %3165 = vdwg.mxu0
        %3166 = vmatpush.bf16.msra.mxu0 %v2752
        %3167 = vmatpush.bf16.msra.mxu0 %v2744
        %3168 = vmatpush.bf16.msra.mxu0 %v2736
        %3169 = vmatpush.bf16.msra.mxu0 %v2728
        %3170 = vmatpush.bf16.msra.mxu0 %v2720
        %3171 = vmatpush.bf16.msra.mxu0 %v2712
        %3172 = vmatpush.bf16.msra.mxu0 %v2704
        %3173 = vmatpush.bf16.msra.mxu0 %v2696
        %3174 = vmatmul.bf16.gmra.mxu0 %v2092
        %v3175 = vpop.f32.mrf.mxu0
        %v3176 = vadd.f32 %v3157, %v3175
        %v3177 = vpop.f32.mrf.mxu0
        %v3178 = vadd.f32 %v3159, %v3177
        %3179 = vmatmul.bf16.gmra.mxu0 %v2094
        %v3180 = vpop.f32.mrf.mxu0
        %v3181 = vadd.f32 %v3162, %v3180
        %v3182 = vpop.f32.mrf.mxu0
        %v3183 = vadd.f32 %v3164, %v3182
        %3184 = vdwg.mxu0
        %v3185 = vmul.f32 %v2910, 0.5
        %v3186 = vmul.f32 %v2948, 0.5
        %v3187 = vmul.f32 %v2986, 0.5
        %v3188 = vmul.f32 %v3024, 0.5
        %v3189 = vmul.f32 %v3062, 0.5
        %v3190 = vmul.f32 %v3100, 0.5
        %v3191 = vmul.f32 %v3138, 0.5
        %v3192 = vmul.f32 %v3176, 0.5
        %v3193 = vmul.f32 %v2912, 0.5
        %v3194 = vmul.f32 %v2950, 0.5
        %v3195 = vmul.f32 %v2988, 0.5
        %v3196 = vmul.f32 %v3026, 0.5
        %v3197 = vmul.f32 %v3064, 0.5
        %v3198 = vmul.f32 %v3102, 0.5
        %v3199 = vmul.f32 %v3140, 0.5
        %v3200 = vmul.f32 %v3178, 0.5
        %v3201 = vmul.f32 %v2915, 0.5
        %v3202 = vmul.f32 %v2953, 0.5
        %v3203 = vmul.f32 %v2991, 0.5
        %v3204 = vmul.f32 %v3029, 0.5
        %v3205 = vmul.f32 %v3067, 0.5
        %v3206 = vmul.f32 %v3105, 0.5
        %v3207 = vmul.f32 %v3143, 0.5
        %v3208 = vmul.f32 %v3181, 0.5
        %v3209 = vmul.f32 %v2917, 0.5
        %v3210 = vmul.f32 %v2955, 0.5
        %v3211 = vmul.f32 %v2993, 0.5
        %v3212 = vmul.f32 %v3031, 0.5
        %v3213 = vmul.f32 %v3069, 0.5
        %v3214 = vmul.f32 %v3107, 0.5
        %v3215 = vmul.f32 %v3145, 0.5
        %v3216 = vmul.f32 %v3183, 0.5
        %v3217 = vtanh.pop %v3185
        %v3218 = vtanh.pop %v3186
        %v3219 = vtanh.pop %v3187
        %v3220 = vtanh.pop %v3188
        %v3221 = vtanh.pop %v3189
        %v3222 = vtanh.pop %v3190
        %v3223 = vtanh.pop %v3191
        %v3224 = vtanh.pop %v3192
        %v3225 = vtanh.pop %v3193
        %v3226 = vtanh.pop %v3194
        %v3227 = vtanh.pop %v3195
        %v3228 = vtanh.pop %v3196
        %v3229 = vtanh.pop %v3197
        %v3230 = vtanh.pop %v3198
        %v3231 = vtanh.pop %v3199
        %v3232 = vtanh.pop %v3200
        %v3233 = vtanh.pop %v3201
        %v3234 = vtanh.pop %v3202
        %v3235 = vtanh.pop %v3203
        %v3236 = vtanh.pop %v3204
        %v3237 = vtanh.pop %v3205
        %v3238 = vtanh.pop %v3206
        %v3239 = vtanh.pop %v3207
        %v3240 = vtanh.pop %v3208
        %v3241 = vtanh.pop %v3209
        %v3242 = vtanh.pop %v3210
        %v3243 = vtanh.pop %v3211
        %v3244 = vtanh.pop %v3212
        %v3245 = vtanh.pop %v3213
        %v3246 = vtanh.pop %v3214
        %v3247 = vtanh.pop %v3215
        %v3248 = vtanh.pop %v3216
        %v3249 = vadd.f32 %v3217, 1.0
        %v3250 = vadd.f32 %v3218, 1.0
        %v3251 = vadd.f32 %v3219, 1.0
        %v3252 = vadd.f32 %v3220, 1.0
        %v3253 = vadd.f32 %v3221, 1.0
        %v3254 = vadd.f32 %v3222, 1.0
        %v3255 = vadd.f32 %v3223, 1.0
        %v3256 = vadd.f32 %v3224, 1.0
        %v3257 = vadd.f32 %v3225, 1.0
        %v3258 = vadd.f32 %v3226, 1.0
        %v3259 = vadd.f32 %v3227, 1.0
        %v3260 = vadd.f32 %v3228, 1.0
        %v3261 = vadd.f32 %v3229, 1.0
        %v3262 = vadd.f32 %v3230, 1.0
        %v3263 = vadd.f32 %v3231, 1.0
        %v3264 = vadd.f32 %v3232, 1.0
        %v3265 = vadd.f32 %v3233, 1.0
        %v3266 = vadd.f32 %v3234, 1.0
        %v3267 = vadd.f32 %v3235, 1.0
        %v3268 = vadd.f32 %v3236, 1.0
        %v3269 = vadd.f32 %v3237, 1.0
        %v3270 = vadd.f32 %v3238, 1.0
        %v3271 = vadd.f32 %v3239, 1.0
        %v3272 = vadd.f32 %v3240, 1.0
        %v3273 = vadd.f32 %v3241, 1.0
        %v3274 = vadd.f32 %v3242, 1.0
        %v3275 = vadd.f32 %v3243, 1.0
        %v3276 = vadd.f32 %v3244, 1.0
        %v3277 = vadd.f32 %v3245, 1.0
        %v3278 = vadd.f32 %v3246, 1.0
        %v3279 = vadd.f32 %v3247, 1.0
        %v3280 = vadd.f32 %v3248, 1.0
        %v3281 = vmul.f32 %v3249, 0.5
        %v3282 = vmul.f32 %v3250, 0.5
        %v3283 = vmul.f32 %v3251, 0.5
        %v3284 = vmul.f32 %v3252, 0.5
        %v3285 = vmul.f32 %v3253, 0.5
        %v3286 = vmul.f32 %v3254, 0.5
        %v3287 = vmul.f32 %v3255, 0.5
        %v3288 = vmul.f32 %v3256, 0.5
        %v3289 = vmul.f32 %v3257, 0.5
        %v3290 = vmul.f32 %v3258, 0.5
        %v3291 = vmul.f32 %v3259, 0.5
        %v3292 = vmul.f32 %v3260, 0.5
        %v3293 = vmul.f32 %v3261, 0.5
        %v3294 = vmul.f32 %v3262, 0.5
        %v3295 = vmul.f32 %v3263, 0.5
        %v3296 = vmul.f32 %v3264, 0.5
        %v3297 = vmul.f32 %v3265, 0.5
        %v3298 = vmul.f32 %v3266, 0.5
        %v3299 = vmul.f32 %v3267, 0.5
        %v3300 = vmul.f32 %v3268, 0.5
        %v3301 = vmul.f32 %v3269, 0.5
        %v3302 = vmul.f32 %v3270, 0.5
        %v3303 = vmul.f32 %v3271, 0.5
        %v3304 = vmul.f32 %v3272, 0.5
        %v3305 = vmul.f32 %v3273, 0.5
        %v3306 = vmul.f32 %v3274, 0.5
        %v3307 = vmul.f32 %v3275, 0.5
        %v3308 = vmul.f32 %v3276, 0.5
        %v3309 = vmul.f32 %v3277, 0.5
        %v3310 = vmul.f32 %v3278, 0.5
        %v3311 = vmul.f32 %v3279, 0.5
        %v3312 = vmul.f32 %v3280, 0.5
        %3313 = vst [vmem:[%s533] sm:$0xff] %v3281
        %3314 = vst [vmem:[%s533 + $0x8] sm:$0xff] %v3282
        %3315 = vst [vmem:[%s533 + $0x10] sm:$0xff] %v3283
        %3316 = vst [vmem:[%s533 + $0x18] sm:$0xff] %v3284
        %3317 = vst [vmem:[%s533 + $0x20] sm:$0xff] %v3285
        %3318 = vst [vmem:[%s533 + $0x28] sm:$0xff] %v3286
        %3319 = vst [vmem:[%s533 + $0x30] sm:$0xff] %v3287
        %3320 = vst [vmem:[%s533 + $0x38] sm:$0xff] %v3288
        %3321 = vst [vmem:[%s533 + $0x40] sm:$0xff] %v3289
        %3322 = vst [vmem:[%s533 + $0x48] sm:$0xff] %v3290
        %3323 = vst [vmem:[%s533 + $0x50] sm:$0xff] %v3291
        %3324 = vst [vmem:[%s533 + $0x58] sm:$0xff] %v3292
        %3325 = vst [vmem:[%s533 + $0x60] sm:$0xff] %v3293
        %3326 = vst [vmem:[%s533 + $0x68] sm:$0xff] %v3294
        %3327 = vst [vmem:[%s533 + $0x70] sm:$0xff] %v3295
        %3328 = vst [vmem:[%s533 + $0x78] sm:$0xff] %v3296
        %3329 = vst [vmem:[%s533 + $0x80] sm:$0xff] %v3297
        %3330 = vst [vmem:[%s533 + $0x88] sm:$0xff] %v3298
        %3331 = vst [vmem:[%s533 + $0x90] sm:$0xff] %v3299
        %3332 = vst [vmem:[%s533 + $0x98] sm:$0xff] %v3300
        %3333 = vst [vmem:[%s533 + $0xa0] sm:$0xff] %v3301
        %3334 = vst [vmem:[%s533 + $0xa8] sm:$0xff] %v3302
        %3335 = vst [vmem:[%s533 + $0xb0] sm:$0xff] %v3303
        %3336 = vst [vmem:[%s533 + $0xb8] sm:$0xff] %v3304
        %3337 = vst [vmem:[%s533 + $0xc0] sm:$0xff] %v3305
        %3338 = vst [vmem:[%s533 + $0xc8] sm:$0xff] %v3306
        %3339 = vst [vmem:[%s533 + $0xd0] sm:$0xff] %v3307
        %3340 = vst [vmem:[%s533 + $0xd8] sm:$0xff] %v3308
        %3341 = vst [vmem:[%s533 + $0xe0] sm:$0xff] %v3309
        %3342 = vst [vmem:[%s533 + $0xe8] sm:$0xff] %v3310
        %3343 = vst [vmem:[%s533 + $0xf0] sm:$0xff] %v3311
        %3344 = vst [vmem:[%s533 + $0xf8] sm:$0xff] %v3312
        %s3345 = sand.u32 %s276, 1
        %s3346 = scalar_lea.sflag [#allocation4], %s3345
        %s3347 = sand.u32 %s276, 1
        %s3348 = smul.addr %s3347, 256
        %s3349 = scalar_lea.vmem [#allocation17], %s3348
        // Predicated region
        $region101: #{contrastive_diffusion_autoencoder.1} parent=63 // pred_check
          %p3350 = pneg %p286
        $region102: #{contrastive_diffusion_autoencoder.1} parent=63 // pred_check_branch
          %3352 = sbr.rel (%p3350) target = $region104
        $region103: #{contrastive_diffusion_autoencoder.1} parent=63 // pred_region
          %s3353 = smul.u32 4, %s32
          %3355 = vsyncadd %s3346, 0
          %s3356 = smul.addr %s3353, 8
          %s3357 = smul.addr %s3356, 8
          %s3358 = scalar_lea.hbm %s11, %s3357
          %s3359 = sshll.u32 %s3349, 4
          %s3360 = int_to_ptr.vmem [resolvable:$true] %s3359
          %s3361 = sshll.u32 %s3358, 4
          %s3362 = int_to_ptr.hbm [resolvable:$true] %s3361
          %3367 = dma.vmem_to_hbm [thread:$0]  %s3360, 4096, %s3362, %s3346, 1024, 1024, 64
        $region104: #{contrastive_diffusion_autoencoder.1} parent=63 // pred_fallthru
          _
      $region64: #{contrastive_diffusion_autoencoder.1} parent=5 // pred_fallthru
        _
      %p3368 = scmp.le.s32.totalorder 2, %s27
      // Predicated region
      $region105: #{contrastive_diffusion_autoencoder.1} parent=5 // pred_check
        %p3369 = pneg %p3368
      $region106: #{contrastive_diffusion_autoencoder.1} parent=5 // pred_check_branch
        %3371 = sbr.rel (%p3369) target = $region108
      $region107: #{contrastive_diffusion_autoencoder.1} parent=5 // pred_region
        %s3372 = ssub.s32 %s27, 2
        // Predicated region
        $region109: #{contrastive_diffusion_autoencoder.1} parent=107 // pred_check
          %p3373 = pneg %p292
        $region110: #{contrastive_diffusion_autoencoder.1} parent=107 // pred_check_branch
          %3375 = sbr.rel (%p3373) target = $region112
        $region111: #{contrastive_diffusion_autoencoder.1} parent=107 // pred_region
          %s3376 = sand.u32 %s277, 1
          %s3377 = scalar_lea.sflag [#allocation4], %s3376
          %s3378 = sand.u32 %s277, 1
          %s3379 = smul.addr %s3378, 256
          %s3380 = scalar_lea.vmem [#allocation17], %s3379
          %3382 = dma.done %s3377, 4096
        $region112: #{contrastive_diffusion_autoencoder.1} parent=107 // pred_fallthru
          _
      $region108: #{contrastive_diffusion_autoencoder.1} parent=5 // pred_fallthru
        _
    $region6: #{contrastive_diffusion_autoencoder.1} parent=1 // loop_footer
      %s31 = sadd.s32 1, %s27
    $region7: #{contrastive_diffusion_autoencoder.1} parent=1 // loop_footer_branch
      %26 = sbr.rel target = $region3
    $region8: #{contrastive_diffusion_autoencoder.1} parent=1 // loop_exit
      _
    %3383 = vsyncpa [#allocation3], 1
    %s3384 = scalar_lea.sflag [#allocation3], 1
    %3385 = vsyncpa %s3384, 1
    %3386 = vsyncpa [#allocation6], 1
    %3387 = vsyncpa [#allocation9], 1
    %3388 = vsyncpa [#allocation12], 1
    %3389 = vsyncpa [#allocation15], 1
    %3390 = vsyncpa [#allocation4], 1
    %s3391 = scalar_lea.sflag [#allocation4], 1
    %3392 = vsyncpa %s3391, 1

</llo_original>
